<compile_context>
chip_gen: v7x
topology: tpu7x:2x2x1
jax: 0.10.0
libtpu: 0.0.40
codegen_flags: <defaults>
</compile_context>

<pallas_src>
import math
import functools

import jax
import jax.numpy as jnp
from jax.experimental import pallas as pl
from jax.experimental.pallas import tpu as pltpu


def _round_up(x, m):
    return ((x + m - 1) // m) * m


# ----------------------------------------------------------------------------
# Fused Pallas kernel: all 1x1-conv layers + activations on one resident tile
# ----------------------------------------------------------------------------
def _synthesis_kernel(x_ref, *refs, activations, neg_slope):
    # x_ref : (1, C_in, TM)   pixels on the lane axis
    # refs  : w0, b0, w1, b1, ..., o_ref
    #   w_l : (C_out_l, C_in_l)   b_l : (C_out_l, 1)   o_ref : (1, C_out, TM)
    o_ref = refs[-1]
    wb = refs[:-1]

    x = x_ref[0].astype(jnp.float32)                       # (C_in, TM)
    for layer, act in enumerate(activations):
        w = wb[2 * layer][...].astype(jnp.float32)         # (Co, Ci)
        b = wb[2 * layer + 1][...].astype(jnp.float32)     # (Co, 1)
        c_in = w.shape[1]
        if c_in <= 8:
            # Tiny contraction dim (coords): statically-unrolled VPU broadcast-FMA
            # outer products instead of a <4%-utilized MXU matmul.
            y = b + w[:, 0:1] * x[0:1, :]
            for k in range(1, c_in):
                y = y + w[:, k:k + 1] * x[k:k + 1, :]
        else:
            y = jnp.dot(w, x, preferred_element_type=jnp.float32) + b
        if act == "sin":
            y = jnp.sin(y)                                  # EUP transcendental
        elif act == "leaky_relu":
            y = jnp.where(y >= 0, y, neg_slope * y)         # VPU cmp + select
        elif act == "none":
            pass
        else:
            raise ValueError(f"unknown activation {act}")
        x = y
    o_ref[0] = x.astype(o_ref.dtype)                        # lane-dense store


# ----------------------------------------------------------------------------
# pallas_call wrapper
# ----------------------------------------------------------------------------
def _choose_pixel_tile(n, hw, max_tile=2048, min_steps=2):
    """Largest lane tile (multiple of 128, <= max_tile) that still gives >= min_steps
    grid steps (so the DMA pipeline has work to overlap and both v7x cores get fed),
    while never exceeding the (128-padded) spatial extent itself."""
    hw128 = _round_up(hw, 128)
    for tm in (2048, 1024, 512, 256, 128):
        if tm > max_tile or tm > hw128:
            continue
        if n * pl.cdiv(hw, tm) >= min_steps:
            return tm
    return 128


def synthesis_input_pallas(params, x3d, *, tm):
    """x3d: (N, C_in, HW_pad) float32 with HW_pad % tm == 0. Returns (N, C_out, HW_pad)."""
    n, c_in0, hw = x3d.shape
    assert hw % tm == 0 and tm % 128 == 0
    c_out = params[-1][0].shape[0]
    activations = tuple(act for (_, _, act) in params)

    flat_inputs = [x3d]
    in_specs = [pl.BlockSpec((1, c_in0, tm), lambda b, p: (b, 0, p))]
    for (wk, bk, _) in params:
        flat_inputs.append(wk)
        flat_inputs.append(bk.reshape(bk.shape[0], 1))
        # Constant index maps: weights/biases stay resident in VMEM across the grid.
        in_specs.append(pl.BlockSpec(wk.shape, lambda b, p: (0, 0)))
        in_specs.append(pl.BlockSpec((bk.shape[0], 1), lambda b, p: (0, 0)))

    kernel = functools.partial(
        _synthesis_kernel, activations=activations, neg_slope=0.2)

    return pl.pallas_call(
        kernel,
        out_shape=jax.ShapeDtypeStruct((n, c_out, hw), x3d.dtype),
        grid_spec=pltpu.PrefetchScalarGridSpec(
            num_scalar_prefetch=0,
            grid=(n, hw // tm),
            in_specs=in_specs,
            out_specs=pl.BlockSpec((1, c_out, tm), lambda b, p: (b, 0, p)),
        ),
        compiler_params=pltpu.CompilerParams(
            dimension_semantics=("parallel", "parallel")),
    )(*flat_inputs)


# ----------------------------------------------------------------------------
# Parameter init (mirrors the PyTorch __init__ distributions; weights are (out, in))
# ----------------------------------------------------------------------------
def init_synthesis_input_params(key, input_dim, output_dim, num_layers=1):
    params = []
    # Layer 0: Conv2d(input_dim, output_dim, 1), weight ~ U(-sqrt(9/in), sqrt(9/in)),
    # bias keeps PyTorch Conv2d default U(-1/sqrt(fan_in), 1/sqrt(fan_in)); then Sin.
    key, kw, kb = jax.random.split(key, 3)
    bound_w = math.sqrt(9.0 / input_dim)
    w0 = jax.random.uniform(kw, (output_dim, input_dim), jnp.float32,
                            minval=-bound_w, maxval=bound_w)
    bound_b = 1.0 / math.sqrt(input_dim)
    b0 = jax.random.uniform(kb, (output_dim,), jnp.float32,
                            minval=-bound_b, maxval=bound_b)
    params.append((w0, b0, "sin"))

    # Layers 1..num_layers-1: kaiming_normal(a=0.2, fan_in, leaky_relu) weight,
    # default conv bias; LeakyReLU(0.2).
    for _ in range(1, num_layers):
        key, kw, kb = jax.random.split(key, 3)
        a = 0.2
        gain = math.sqrt(2.0 / (1.0 + a * a))
        std = gain / math.sqrt(output_dim)
        w = std * jax.random.normal(kw, (output_dim, output_dim), jnp.float32)
        bound_b = 1.0 / math.sqrt(output_dim)
        b = jax.random.uniform(kb, (output_dim,), jnp.float32,
                               minval=-bound_b, maxval=bound_b)
        params.append((w, b, "leaky_relu"))
    return params


# get_2d_coords helper from the PyTorch module (JAX equivalent), NCHW layout.
def get_2d_coords(batch_size, height, width, dtype=jnp.float32):
    i = jnp.linspace(-1.0, 1.0, height, dtype=dtype)
    j = jnp.linspace(-1.0, 1.0, width, dtype=dtype)
    ii, jj = jnp.meshgrid(i, j, indexing="ij")
    coords = jnp.stack([ii, jj], axis=0)                  # (2, H, W)
    return jnp.broadcast_to(coords[None], (batch_size, 2, height, width))


# ----------------------------------------------------------------------------
# Forward pass (NCHW in, NCHW out — no transposes, one fused kernel)
# ----------------------------------------------------------------------------
def synthesis_input_forward(params, coords_nchw, *, max_tile=2048):
    n, c, h, w = coords_nchw.shape
    hw = h * w
    tm = _choose_pixel_tile(n, hw, max_tile=max_tile)
    hw_pad = _round_up(hw, tm)
    x = coords_nchw.reshape(n, c, hw)
    if hw_pad != hw:                     # masked-tail handling via zero padding
        x = jnp.pad(x, ((0, 0), (0, 0), (0, hw_pad - hw)))
    out = synthesis_input_pallas(params, x, tm=tm)        # (n, c_out, hw_pad)
    if hw_pad != hw:
        out = out[:, :, :hw]
    c_out = params[-1][0].shape[0]
    return out.reshape(n, c_out, h, w)


# Reference in plain JAX (for a silent correctness check)
def synthesis_input_ref(params, coords_nchw):
    x = coords_nchw
    for (wk, bk, act) in params:
        x = jnp.einsum("oc,nchw->nohw", wk, x,
                       precision=jax.lax.Precision.HIGHEST)
        x = x + bk[None, :, None, None]
        if act == "sin":
            x = jnp.sin(x)
        elif act == "leaky_relu":
            x = jnp.where(x >= 0, x, 0.2 * x)
    return x


if __name__ == "__main__":
    key = jax.random.PRNGKey(0)
    k_params, k_input = jax.random.split(key)

    # Small shapes: batch=2, input_dim=4, output_dim=32, H=W=16, num_layers=2
    # (num_layers=2 exercises both the Sin and the LeakyReLU activation paths,
    #  and both the VPU-FMA and MXU branches of the fused kernel).
    batch, input_dim, output_dim, H, W = 2, 4, 32, 16, 16
    num_layers = 2

    params = init_synthesis_input_params(k_params, input_dim, output_dim, num_layers)
    coords = jax.random.normal(k_input, (batch, input_dim, H, W), jnp.float32)

    out = synthesis_input_forward(params, coords)
    out = jax.block_until_ready(out)

    ref = synthesis_input_ref(params, coords)
    assert out.shape == (batch, output_dim, H, W)
    assert jnp.allclose(out, ref, atol=2e-5, rtol=2e-5)

    print("KERNEL_OK")
</pallas_src>

<mosaic_0001>
module attributes {stable_mosaic.version = 11 : i64} {
  func.func @_synthesis_kernel(%arg0: i32, %arg1: i32, %arg2: memref<1x4x256xf32, #tpu.memory_space<vmem>>, %arg3: memref<32x4xf32, #tpu.memory_space<vmem>>, %arg4: memref<32x1xf32, #tpu.memory_space<vmem>>, %arg5: memref<32x32xf32, #tpu.memory_space<vmem>>, %arg6: memref<32x1xf32, #tpu.memory_space<vmem>>, %arg7: memref<1x32x256xf32, #tpu.memory_space<vmem>>) attributes {dimension_semantics = [#tpu.dimension_semantics<parallel>, #tpu.dimension_semantics<parallel>], iteration_bounds = array<i64: 2, 1>, scalar_prefetch = 0 : i64, scratch_operands = 0 : i64, tpu.core_type = #tpu.core_type<tc>, window_params = [{transform_indices = @transform_0, window_bounds = array<i64: 1, 4, 256>}, {pipeline_mode = #tpu.pipeline_mode<synchronous>, transform_indices = @transform_1, window_bounds = array<i64: 32, 4>}, {pipeline_mode = #tpu.pipeline_mode<synchronous>, transform_indices = @transform_2, window_bounds = array<i64: 32, 1>}, {pipeline_mode = #tpu.pipeline_mode<synchronous>, transform_indices = @transform_3, window_bounds = array<i64: 32, 32>}, {pipeline_mode = #tpu.pipeline_mode<synchronous>, transform_indices = @transform_4, window_bounds = array<i64: 32, 1>}, {transform_indices = @transform_5, window_bounds = array<i64: 1, 32, 256>}]} {
    %c0 = arith.constant 0 : index
    %c0_0 = arith.constant 0 : index
    %c0_1 = arith.constant 0 : index
    %0 = vector.load %arg2[%c0, %c0_0, %c0_1] : memref<1x4x256xf32, #tpu.memory_space<vmem>>, vector<1x4x256xf32>
    %1 = vector.shape_cast %0 : vector<1x4x256xf32> to vector<4x256xf32>
    %c0_2 = arith.constant 0 : index
    %c0_3 = arith.constant 0 : index
    %2 = vector.load %arg3[%c0_2, %c0_3] : memref<32x4xf32, #tpu.memory_space<vmem>>, vector<32x4xf32>
    %c0_4 = arith.constant 0 : index
    %c0_5 = arith.constant 0 : index
    %3 = vector.load %arg4[%c0_4, %c0_5] : memref<32x1xf32, #tpu.memory_space<vmem>>, vector<32x1xf32>
    %4 = vector.extract_strided_slice %2 {offsets = [0, 0], sizes = [32, 1], strides = [1, 1]} : vector<32x4xf32> to vector<32x1xf32>
    %5 = vector.extract_strided_slice %1 {offsets = [0, 0], sizes = [1, 256], strides = [1, 1]} : vector<4x256xf32> to vector<1x256xf32>
    %6 = vector.broadcast %4 : vector<32x1xf32> to vector<32x256xf32>
    %7 = vector.broadcast %5 : vector<1x256xf32> to vector<32x256xf32>
    %8 = arith.mulf %6, %7 : vector<32x256xf32>
    %9 = vector.broadcast %3 : vector<32x1xf32> to vector<32x256xf32>
    %10 = arith.addf %9, %8 : vector<32x256xf32>
    %11 = vector.extract_strided_slice %2 {offsets = [0, 1], sizes = [32, 1], strides = [1, 1]} : vector<32x4xf32> to vector<32x1xf32>
    %12 = vector.extract_strided_slice %1 {offsets = [1, 0], sizes = [1, 256], strides = [1, 1]} : vector<4x256xf32> to vector<1x256xf32>
    %13 = vector.broadcast %11 : vector<32x1xf32> to vector<32x256xf32>
    %14 = vector.broadcast %12 : vector<1x256xf32> to vector<32x256xf32>
    %15 = arith.mulf %13, %14 : vector<32x256xf32>
    %16 = arith.addf %10, %15 : vector<32x256xf32>
    %17 = vector.extract_strided_slice %2 {offsets = [0, 2], sizes = [32, 1], strides = [1, 1]} : vector<32x4xf32> to vector<32x1xf32>
    %18 = vector.extract_strided_slice %1 {offsets = [2, 0], sizes = [1, 256], strides = [1, 1]} : vector<4x256xf32> to vector<1x256xf32>
    %19 = vector.broadcast %17 : vector<32x1xf32> to vector<32x256xf32>
    %20 = vector.broadcast %18 : vector<1x256xf32> to vector<32x256xf32>
    %21 = arith.mulf %19, %20 : vector<32x256xf32>
    %22 = arith.addf %16, %21 : vector<32x256xf32>
    %23 = vector.extract_strided_slice %2 {offsets = [0, 3], sizes = [32, 1], strides = [1, 1]} : vector<32x4xf32> to vector<32x1xf32>
    %24 = vector.extract_strided_slice %1 {offsets = [3, 0], sizes = [1, 256], strides = [1, 1]} : vector<4x256xf32> to vector<1x256xf32>
    %25 = vector.broadcast %23 : vector<32x1xf32> to vector<32x256xf32>
    %26 = vector.broadcast %24 : vector<1x256xf32> to vector<32x256xf32>
    %27 = arith.mulf %25, %26 : vector<32x256xf32>
    %28 = arith.addf %22, %27 : vector<32x256xf32>
    %29 = math.sin %28 : vector<32x256xf32>
    %c0_6 = arith.constant 0 : index
    %c0_7 = arith.constant 0 : index
    %30 = vector.load %arg5[%c0_6, %c0_7] : memref<32x32xf32, #tpu.memory_space<vmem>>, vector<32x32xf32>
    %c0_8 = arith.constant 0 : index
    %c0_9 = arith.constant 0 : index
    %31 = vector.load %arg6[%c0_8, %c0_9] : memref<32x1xf32, #tpu.memory_space<vmem>>, vector<32x1xf32>
    %cst = arith.constant dense<0.000000e+00> : vector<32x256xf32>
    %32 = tpu.matmul %30, %29, %cst {dimension_numbers = #tpu.dot_dimension_numbers<[1], [0], [0], [1], [0, 0, 1, 1], [], []>} : vector<32x32xf32>, vector<32x256xf32>, vector<32x256xf32> -> vector<32x256xf32>
    %33 = vector.broadcast %31 : vector<32x1xf32> to vector<32x256xf32>
    %34 = arith.addf %32, %33 : vector<32x256xf32>
    %cst_10 = arith.constant 0.000000e+00 : f32
    %35 = vector.broadcast %cst_10 : f32 to vector<32x256xf32>
    %36 = arith.cmpf oge, %34, %35 : vector<32x256xf32>
    %cst_11 = arith.constant 2.000000e-01 : f32
    %37 = vector.broadcast %cst_11 : f32 to vector<32x256xf32>
    %38 = arith.mulf %37, %34 : vector<32x256xf32>
    %39 = arith.select %36, %34, %38 : vector<32x256xi1>, vector<32x256xf32>
    %c0_12 = arith.constant 0 : index
    %c0_13 = arith.constant 0 : index
    %c0_14 = arith.constant 0 : index
    %40 = vector.load %arg7[%c0_12, %c0_13, %c0_14] : memref<1x32x256xf32, #tpu.memory_space<vmem>>, vector<1x32x256xf32>
    %41 = vector.shape_cast %40 : vector<1x32x256xf32> to vector<32x256xf32>
    %42 = vector.shape_cast %39 : vector<32x256xf32> to vector<1x32x256xf32>
    tpu.vector_store %arg7[%c0_12, %c0_13, %c0_14], %42 {strides = array<i32>} : memref<1x32x256xf32, #tpu.memory_space<vmem>>, vector<1x32x256xf32>,
    return
  }
  func.func @transform_0(%arg0: i32, %arg1: i32) -> (i32, i32, i32) {
    %c0_i32 = arith.constant 0 : i32
    %c0_i32_0 = arith.constant 0 : i32
    return %arg0, %c0_i32, %arg1 : i32, i32, i32
  }
  func.func @transform_1(%arg0: i32, %arg1: i32) -> (i32, i32) {
    %c0_i32 = arith.constant 0 : i32
    %c0_i32_0 = arith.constant 0 : i32
    %c0_i32_1 = arith.constant 0 : i32
    return %c0_i32, %c0_i32_0 : i32, i32
  }
  func.func @transform_2(%arg0: i32, %arg1: i32) -> (i32, i32) {
    %c0_i32 = arith.constant 0 : i32
    %c0_i32_0 = arith.constant 0 : i32
    %c0_i32_1 = arith.constant 0 : i32
    return %c0_i32, %c0_i32_0 : i32, i32
  }
  func.func @transform_3(%arg0: i32, %arg1: i32) -> (i32, i32) {
    %c0_i32 = arith.constant 0 : i32
    %c0_i32_0 = arith.constant 0 : i32
    %c0_i32_1 = arith.constant 0 : i32
    return %c0_i32, %c0_i32_0 : i32, i32
  }
  func.func @transform_4(%arg0: i32, %arg1: i32) -> (i32, i32) {
    %c0_i32 = arith.constant 0 : i32
    %c0_i32_0 = arith.constant 0 : i32
    %c0_i32_1 = arith.constant 0 : i32
    return %c0_i32, %c0_i32_0 : i32, i32
  }
  func.func @transform_5(%arg0: i32, %arg1: i32) -> (i32, i32, i32) {
    %c0_i32 = arith.constant 0 : i32
    %c0_i32_0 = arith.constant 0 : i32
    return %arg0, %c0_i32, %arg1 : i32, i32, i32
  }
}

</mosaic_0001>

<llo_original>
// kernel: tpu_custom_call.1
$region0: #{tpu_custom_call.1}
  #allocation0 [shape = 'u32[]', space=smem, size = 0x4, offset = 0x4, fixed_abs, tag = 'smem constant byte address 0x4 - core index']
  #allocation1 [shape = 'u32[144,128]{1,0:T(1,128)}', space=vmem, size = 0x12000, scoped, tag = 'internal scratch']
  %s0 = inlined_call_operand.vmem [shape: f32[2,4,256], index: 0, kind: input, shape index: {}]
  %s1 = inlined_call_operand.vmem [shape: f32[32,4], index: 1, kind: input, shape index: {}]
  %s2 = inlined_call_operand.vmem [shape: f32[32,1], index: 2, kind: input, shape index: {}]
  %s3 = inlined_call_operand.vmem [shape: f32[32,32], index: 3, kind: input, shape index: {}]
  %s4 = inlined_call_operand.vmem [shape: f32[32,1], index: 4, kind: input, shape index: {}]
  %s5 = inlined_call_operand.hbm [shape: f32[2,32,256], index: 5, kind: output, shape index: {}]
  %s6 = sld [smem:[#allocation0]]
  $region53: #{tpu_custom_call.1} parent=0
    _
  %s8 = ssub.s32 1, %s6
  %s9 = scalar_select 0, %s8, %s6
  $region1: #{tpu_custom_call.1} parent=0
    #allocation2 [shape = 'u8[65536]{0}', space=vmem, size = 0x10000, scoped, tag = 'output window, operand 0']
    #allocation3 [shape = 's32[2]{0}', space=sflag, size = 0x8, scoped, tag = 'scoped memory for tpu_custom_call.1']
    %10 = vsyncpa [#allocation3], 0
    %s11 = scalar_lea.sflag [#allocation3], 1
    %12 = vsyncpa %s11, 0
    loop: start=0, step=1, limit=4
    $region2: #{tpu_custom_call.1} parent=1 // loop_pre_header
      _
    $region3: #{tpu_custom_call.1} parent=1 // loop_header
      %s14 = sphi 0, %s18
      %p15 = scmp.ge.s32.totalorder %s14, 4
      %s21 = sphi 0, %s33
      %s22 = sphi 0, %s29
      %s23 = sphi 0, %s21
      %s24 = sphi 0, %s22
      %s25 = sphi 0, %s23
      %s26 = sphi 0, %s24
      %s38 = sphi 0, %s40
      %s41 = sphi 0, %s38
      %s42 = sphi 0, %s41
      %s58 = sphi 0, %s42
      %s62 = sphi 0, %s62
      %s64 = sphi 0, %s62
      %s65 = sphi 0, %s64
      %s79 = sphi 0, %s65
      %s83 = sphi 0, %s83
      %s85 = sphi 0, %s83
      %s86 = sphi 0, %s85
      %s100 = sphi 0, %s86
      %s104 = sphi 0, %s104
      %s106 = sphi 0, %s104
      %s107 = sphi 0, %s106
      %s121 = sphi 0, %s107
      %s125 = sphi 0, %s125
      %s127 = sphi 0, %s125
      %s128 = sphi 0, %s127
      %s142 = sphi 0, %s128
      %s150 = sphi 0, %s152
      %s153 = sphi 0, %s150
      %s154 = sphi 0, %s153
      %s170 = sphi 0, %s154
    $region4: #{tpu_custom_call.1} parent=1 // loop_header_branch
      %17 = sbr.rel (%p15) target = $region8
    $region5: #{tpu_custom_call.1} parent=1 // loop_body
      %s19 = ssub.s32 %s14, 1
      %s20 = ssub.s32 %s14, 2
      %s27 = sadd.s32 1, %s22
      %p28 = scmp.ge.s32.totalorder %s27, 1
      %s29 = scalar_select %p28, 0, %s27
      %s30 = sadd.s32 1, %s21
      %s31 = scalar_select %p28, %s30, %s21
      %p32 = scmp.ge.s32.totalorder %s31, 2
      %s33 = scalar_select %p32, 0, %s31
      %s34 = ssub.s32 %s21, %s33
      %s35 = ssub.s32 %s22, %s29
      %s36 = sor.u32 %s34, %s35
      %p37 = scmp.eq.s32.totalorder %s36, 0
      %s39 = sadd.s32 %s38, 1
      %s40 = scalar_select %p37, %s38, %s39
      %p43 = pneg %p37
      %p44 = scmp.eq.s32.totalorder %s14, 1
      %p45 = por %p43, %p44
      %p46 = scmp.ne.s32.totalorder %s38, %s41
      %p47 = scmp.eq.s32.totalorder %s14, 0
      %p48 = por %p46, %p47
      %p49 = scmp.ne.s32.totalorder %s38, %s41
      %p50 = scmp.eq.s32.totalorder %s19, 1
      %p51 = por %p49, %p50
      %p52 = scmp.ne.s32.totalorder %s41, %s42
      %p53 = scmp.eq.s32.totalorder %s19, 0
      %p54 = por %p52, %p53
      %p55 = scmp.ne.s32.totalorder %s41, %s42
      %p56 = scmp.eq.s32.totalorder %s20, 1
      %p57 = por %p55, %p56
      %p59 = scmp.ne.s32.totalorder %s42, %s58
      %p60 = scmp.eq.s32.totalorder %s20, 0
      %p61 = por %p59, %p60
      %s63 = sadd.s32 %s62, 1
      %p66 = scmp.eq.s32.totalorder %s14, 1
      %p67 = scmp.ne.s32.totalorder %s62, %s64
      %p68 = scmp.eq.s32.totalorder %s14, 0
      %p69 = por %p67, %p68
      %p70 = scmp.ne.s32.totalorder %s62, %s64
      %p71 = scmp.eq.s32.totalorder %s19, 1
      %p72 = por %p70, %p71
      %p73 = scmp.ne.s32.totalorder %s64, %s65
      %p74 = scmp.eq.s32.totalorder %s19, 0
      %p75 = por %p73, %p74
      %p76 = scmp.ne.s32.totalorder %s64, %s65
      %p77 = scmp.eq.s32.totalorder %s20, 1
      %p78 = por %p76, %p77
      %p80 = scmp.ne.s32.totalorder %s65, %s79
      %p81 = scmp.eq.s32.totalorder %s20, 0
      %p82 = por %p80, %p81
      %s84 = sadd.s32 %s83, 1
      %p87 = scmp.eq.s32.totalorder %s14, 1
      %p88 = scmp.ne.s32.totalorder %s83, %s85
      %p89 = scmp.eq.s32.totalorder %s14, 0
      %p90 = por %p88, %p89
      %p91 = scmp.ne.s32.totalorder %s83, %s85
      %p92 = scmp.eq.s32.totalorder %s19, 1
      %p93 = por %p91, %p92
      %p94 = scmp.ne.s32.totalorder %s85, %s86
      %p95 = scmp.eq.s32.totalorder %s19, 0
      %p96 = por %p94, %p95
      %p97 = scmp.ne.s32.totalorder %s85, %s86
      %p98 = scmp.eq.s32.totalorder %s20, 1
      %p99 = por %p97, %p98
      %p101 = scmp.ne.s32.totalorder %s86, %s100
      %p102 = scmp.eq.s32.totalorder %s20, 0
      %p103 = por %p101, %p102
      %s105 = sadd.s32 %s104, 1
      %p108 = scmp.eq.s32.totalorder %s14, 1
      %p109 = scmp.ne.s32.totalorder %s104, %s106
      %p110 = scmp.eq.s32.totalorder %s14, 0
      %p111 = por %p109, %p110
      %p112 = scmp.ne.s32.totalorder %s104, %s106
      %p113 = scmp.eq.s32.totalorder %s19, 1
      %p114 = por %p112, %p113
      %p115 = scmp.ne.s32.totalorder %s106, %s107
      %p116 = scmp.eq.s32.totalorder %s19, 0
      %p117 = por %p115, %p116
      %p118 = scmp.ne.s32.totalorder %s106, %s107
      %p119 = scmp.eq.s32.totalorder %s20, 1
      %p120 = por %p118, %p119
      %p122 = scmp.ne.s32.totalorder %s107, %s121
      %p123 = scmp.eq.s32.totalorder %s20, 0
      %p124 = por %p122, %p123
      %s126 = sadd.s32 %s125, 1
      %p129 = scmp.eq.s32.totalorder %s14, 1
      %p130 = scmp.ne.s32.totalorder %s125, %s127
      %p131 = scmp.eq.s32.totalorder %s14, 0
      %p132 = por %p130, %p131
      %p133 = scmp.ne.s32.totalorder %s125, %s127
      %p134 = scmp.eq.s32.totalorder %s19, 1
      %p135 = por %p133, %p134
      %p136 = scmp.ne.s32.totalorder %s127, %s128
      %p137 = scmp.eq.s32.totalorder %s19, 0
      %p138 = por %p136, %p137
      %p139 = scmp.ne.s32.totalorder %s127, %s128
      %p140 = scmp.eq.s32.totalorder %s20, 1
      %p141 = por %p139, %p140
      %p143 = scmp.ne.s32.totalorder %s128, %s142
      %p144 = scmp.eq.s32.totalorder %s20, 0
      %p145 = por %p143, %p144
      %s146 = ssub.s32 %s21, %s33
      %s147 = ssub.s32 %s22, %s29
      %s148 = sor.u32 %s146, %s147
      %p149 = scmp.eq.s32.totalorder %s148, 0
      %s151 = sadd.s32 %s150, 1
      %s152 = scalar_select %p149, %s150, %s151
      %p155 = pneg %p149
      %p156 = scmp.eq.s32.totalorder %s14, 1
      %p157 = por %p155, %p156
      %p158 = scmp.ne.s32.totalorder %s150, %s153
      %p159 = scmp.eq.s32.totalorder %s14, 0
      %p160 = por %p158, %p159
      %p161 = scmp.ne.s32.totalorder %s150, %s153
      %p162 = scmp.eq.s32.totalorder %s19, 1
      %p163 = por %p161, %p162
      %p164 = scmp.ne.s32.totalorder %s153, %s154
      %p165 = scmp.eq.s32.totalorder %s19, 0
      %p166 = por %p164, %p165
      %p167 = scmp.ne.s32.totalorder %s153, %s154
      %p168 = scmp.eq.s32.totalorder %s20, 1
      %p169 = por %p167, %p168
      %p171 = scmp.ne.s32.totalorder %s154, %s170
      %p172 = scmp.eq.s32.totalorder %s20, 0
      %p173 = por %p171, %p172
      %p174 = scmp.le.s32.totalorder 1, %s14
      %p175 = scmp.lt.s32.totalorder %s14, 3
      %p176 = pnand %p174, %p175
      %p177 = pneg %p176
      // Predicated region
      $region9: #{tpu_custom_call.1} parent=5 // pred_check
        _
      $region10: #{tpu_custom_call.1} parent=5 // pred_check_branch
        %179 = sbr.rel (%p176) target = $region12
      $region11: #{tpu_custom_call.1} parent=5 // pred_region
        %s180 = ssub.s32 %s14, 1
        // Predicated region
        $region13: #{tpu_custom_call.1} parent=11 // pred_check
          %p181 = pneg %p75
        $region14: #{tpu_custom_call.1} parent=11 // pred_check_branch
          %183 = sbr.rel (%p181) target = $region16
        $region15: #{tpu_custom_call.1} parent=11 // pred_region
          _
        $region16: #{tpu_custom_call.1} parent=11 // pred_fallthru
          _
        // Predicated region
        $region17: #{tpu_custom_call.1} parent=11 // pred_check
          %p184 = pneg %p96
        $region18: #{tpu_custom_call.1} parent=11 // pred_check_branch
          %186 = sbr.rel (%p184) target = $region20
        $region19: #{tpu_custom_call.1} parent=11 // pred_region
          _
        $region20: #{tpu_custom_call.1} parent=11 // pred_fallthru
          _
        // Predicated region
        $region21: #{tpu_custom_call.1} parent=11 // pred_check
          %p187 = pneg %p117
        $region22: #{tpu_custom_call.1} parent=11 // pred_check_branch
          %189 = sbr.rel (%p187) target = $region24
        $region23: #{tpu_custom_call.1} parent=11 // pred_region
          _
        $region24: #{tpu_custom_call.1} parent=11 // pred_fallthru
          _
        // Predicated region
        $region25: #{tpu_custom_call.1} parent=11 // pred_check
          %p190 = pneg %p138
        $region26: #{tpu_custom_call.1} parent=11 // pred_check_branch
          %192 = sbr.rel (%p190) target = $region28
        $region27: #{tpu_custom_call.1} parent=11 // pred_region
          _
        $region28: #{tpu_custom_call.1} parent=11 // pred_fallthru
          _
      $region12: #{tpu_custom_call.1} parent=5 // pred_fallthru
        _
      %p193 = scmp.lt.s32.totalorder %s14, 2
      // Predicated region
      $region29: #{tpu_custom_call.1} parent=5 // pred_check
        %p194 = pneg %p193
      $region30: #{tpu_custom_call.1} parent=5 // pred_check_branch
        %196 = sbr.rel (%p194) target = $region32
      $region31: #{tpu_custom_call.1} parent=5 // pred_region
        // Predicated region
        $region33: #{tpu_custom_call.1} parent=31 // pred_check
          %p197 = pneg %p48
        $region34: #{tpu_custom_call.1} parent=31 // pred_check_branch
          %199 = sbr.rel (%p197) target = $region36
        $region35: #{tpu_custom_call.1} parent=31 // pred_region
          %s200 = smul.u32 2, %s22
          %p201 = scmp.lt.s32.totalorder %s21, 1
          %s202 = scalar_select %p201, %s21, 1
          %p203 = scmp.lt.s32.totalorder %s200, 1
          %s204 = scalar_select %p203, %s200, 1
          %s205 = smul.addr %s202, 2
          %s206 = sadd.s32 %s204, %s205
          %s207 = smul.addr %s206, 4
          %s208 = scalar_lea.vmem %s0, %s207
          %s209 = smul.u32 2, %s22
        $region36: #{tpu_custom_call.1} parent=31 // pred_fallthru
          _
      $region32: #{tpu_custom_call.1} parent=5 // pred_fallthru
        _
      %p210 = scmp.le.s32.totalorder 1, %s14
      %p211 = scmp.lt.s32.totalorder %s14, 3
      %p212 = pnand %p210, %p211
      %p213 = pneg %p212
      // Predicated region
      $region37: #{tpu_custom_call.1} parent=5 // pred_check
        _
      $region38: #{tpu_custom_call.1} parent=5 // pred_check_branch
        %215 = sbr.rel (%p212) target = $region40
      $region39: #{tpu_custom_call.1} parent=5 // pred_region
        %s216 = ssub.s32 %s14, 1
        %s217 = smul.u32 2, %s24
        %p218 = scmp.lt.s32.totalorder %s23, 1
        %s219 = scalar_select %p218, %s23, 1
        %p220 = scmp.lt.s32.totalorder %s217, 1
        %s221 = scalar_select %p220, %s217, 1
        %s222 = smul.addr %s219, 2
        %s223 = sadd.s32 %s221, %s222
        %s224 = smul.addr %s223, 4
        %s225 = scalar_lea.vmem %s0, %s224
        %p226 = pneg %p54
        %p227 = pneg %p51
        %p228 = pneg %p75
        %p229 = pneg %p72
        %p230 = pneg %p96
        %p231 = pneg %p93
        %p232 = pneg %p117
        %p233 = pneg %p114
        %p234 = pneg %p138
        %p235 = pneg %p135
        %p236 = pneg %p166
        %p237 = pneg %p163
        %s238 = sand.u32 %s153, 1
        %s239 = scalar_lea.sflag [#allocation3], %s238
        %s240 = sand.u32 %s153, 1
        %s241 = smul.addr %s240, 64
        %s242 = scalar_lea.vmem [#allocation2], %s241
        %s243 = smul.u32 2, %s24
        %p244 = scmp.lt.s32.totalorder %s23, 1
        %s245 = scalar_select %p244, %s23, 1
        %p246 = scmp.lt.s32.totalorder %s243, 1
        %s247 = scalar_select %p246, %s243, 1
        %s248 = smul.addr %s245, 2
        %s249 = sadd.s32 %s247, %s248
        %s250 = smul.addr %s249, 4
        %s251 = scalar_lea.vmem %s0, %s250
        %s252 = smul.u32 2, %s24
        %s253 = smul.u32 2, %s24
        %v254 = vld [vmem:[%s251] sm:$0xff]
        %v255 = vld [vmem:[%s1] sm:$0xff]
        %v256 = vld [vmem:[%s1 + $0x8] sm:$0xff]
        %v257 = vld [vmem:[%s1 + $0x10] sm:$0xff]
        %v258 = vld [vmem:[%s1 + $0x18] sm:$0xff]
        %v259 = vld [vmem:[%s2] sm:$0xff]
        %v260 = vld [vmem:[%s2 + $0x8] sm:$0xff]
        %v261 = vld [vmem:[%s2 + $0x10] sm:$0xff]
        %v262 = vld [vmem:[%s2 + $0x18] sm:$0xff]
        %264 = vset.pattern.permute.xlu0 0
        %265 = vperm.xlu0 %264, %v255
        %v266 = vpop.permute.xlu0 %265
        %269 = vset.pattern.permute.xlu0 0
        %270 = vperm.xlu0 %269, %v256
        %v271 = vpop.permute.xlu0 %270
        %274 = vset.pattern.permute.xlu0 0
        %275 = vperm.xlu0 %274, %v257
        %v276 = vpop.permute.xlu0 %275
        %279 = vset.pattern.permute.xlu0 0
        %280 = vperm.xlu0 %279, %v258
        %v281 = vpop.permute.xlu0 %280
        %v284 = vlaneseq
        %v285 = vshrl.u32 %v284, 7
        %v286 = vsub.s32 0, %v285
        %v287 = vrot.slane %v254, %v286
        %v288 = vlaneseq
        %v289 = vshrl.u32 %v288, 7
        %v290 = vsub.s32 4, %v289
        %v291 = vrot.slane %v254, %v290
        %v294 = vlaneseq
        %v295 = vshrl.u32 %v294, 7
        %v296 = vsub.s32 0, %v295
        %v297 = vrot.slane %v287, %v296
        %v298 = vlaneseq
        %v299 = vshrl.u32 %v298, 7
        %v300 = vsub.s32 0, %v299
        %v301 = vrot.slane %v291, %v300
        %v302 = vmul.f32 %v266, %v297
        %v303 = vmul.f32 %v266, %v301
        %v304 = vmul.f32 %v271, %v297
        %v305 = vmul.f32 %v271, %v301
        %v306 = vmul.f32 %v276, %v297
        %v307 = vmul.f32 %v276, %v301
        %v308 = vmul.f32 %v281, %v297
        %v309 = vmul.f32 %v281, %v301
        %311 = vset.pattern.permute.xlu0 0
        %312 = vperm.xlu0 %311, %v259
        %v313 = vpop.permute.xlu0 %312
        %316 = vset.pattern.permute.xlu0 0
        %317 = vperm.xlu0 %316, %v260
        %v318 = vpop.permute.xlu0 %317
        %321 = vset.pattern.permute.xlu0 0
        %322 = vperm.xlu0 %321, %v261
        %v323 = vpop.permute.xlu0 %322
        %326 = vset.pattern.permute.xlu0 0
        %327 = vperm.xlu0 %326, %v262
        %v328 = vpop.permute.xlu0 %327
        %v330 = vadd.f32 %v313, %v302
        %v331 = vadd.f32 %v313, %v303
        %v332 = vadd.f32 %v318, %v304
        %v333 = vadd.f32 %v318, %v305
        %v334 = vadd.f32 %v323, %v306
        %v335 = vadd.f32 %v323, %v307
        %v336 = vadd.f32 %v328, %v308
        %v337 = vadd.f32 %v328, %v309
        %338 = vset.pattern.permute.xlu0 1
        %339 = vperm.xlu0 %338, %v255
        %v340 = vpop.permute.xlu0 %339
        %342 = vset.pattern.permute.xlu0 1
        %343 = vperm.xlu0 %342, %v256
        %v344 = vpop.permute.xlu0 %343
        %346 = vset.pattern.permute.xlu0 1
        %347 = vperm.xlu0 %346, %v257
        %v348 = vpop.permute.xlu0 %347
        %350 = vset.pattern.permute.xlu0 1
        %351 = vperm.xlu0 %350, %v258
        %v352 = vpop.permute.xlu0 %351
        %v354 = vlaneseq
        %v355 = vshrl.u32 %v354, 7
        %v356 = vsub.s32 1, %v355
        %v357 = vrot.slane %v254, %v356
        %v358 = vlaneseq
        %v359 = vshrl.u32 %v358, 7
        %v360 = vsub.s32 5, %v359
        %v361 = vrot.slane %v254, %v360
        %v364 = vlaneseq
        %v365 = vshrl.u32 %v364, 7
        %v366 = vsub.s32 1, %v365
        %v367 = vrot.slane %v357, %v366
        %v368 = vlaneseq
        %v369 = vshrl.u32 %v368, 7
        %v370 = vsub.s32 1, %v369
        %v371 = vrot.slane %v361, %v370
        %v372 = vmul.f32 %v340, %v367
        %v373 = vmul.f32 %v340, %v371
        %v374 = vmul.f32 %v344, %v367
        %v375 = vmul.f32 %v344, %v371
        %v376 = vmul.f32 %v348, %v367
        %v377 = vmul.f32 %v348, %v371
        %v378 = vmul.f32 %v352, %v367
        %v379 = vmul.f32 %v352, %v371
        %v380 = vadd.f32 %v330, %v372
        %v381 = vadd.f32 %v331, %v373
        %v382 = vadd.f32 %v332, %v374
        %v383 = vadd.f32 %v333, %v375
        %v384 = vadd.f32 %v334, %v376
        %v385 = vadd.f32 %v335, %v377
        %v386 = vadd.f32 %v336, %v378
        %v387 = vadd.f32 %v337, %v379
        %388 = vset.pattern.permute.xlu0 2
        %389 = vperm.xlu0 %388, %v255
        %v390 = vpop.permute.xlu0 %389
        %392 = vset.pattern.permute.xlu0 2
        %393 = vperm.xlu0 %392, %v256
        %v394 = vpop.permute.xlu0 %393
        %396 = vset.pattern.permute.xlu0 2
        %397 = vperm.xlu0 %396, %v257
        %v398 = vpop.permute.xlu0 %397
        %400 = vset.pattern.permute.xlu0 2
        %401 = vperm.xlu0 %400, %v258
        %v402 = vpop.permute.xlu0 %401
        %v404 = vlaneseq
        %v405 = vshrl.u32 %v404, 7
        %v406 = vsub.s32 2, %v405
        %v407 = vrot.slane %v254, %v406
        %v408 = vlaneseq
        %v409 = vshrl.u32 %v408, 7
        %v410 = vsub.s32 6, %v409
        %v411 = vrot.slane %v254, %v410
        %v414 = vlaneseq
        %v415 = vshrl.u32 %v414, 7
        %v416 = vsub.s32 2, %v415
        %v417 = vrot.slane %v407, %v416
        %v418 = vlaneseq
        %v419 = vshrl.u32 %v418, 7
        %v420 = vsub.s32 2, %v419
        %v421 = vrot.slane %v411, %v420
        %v422 = vmul.f32 %v390, %v417
        %v423 = vmul.f32 %v390, %v421
        %v424 = vmul.f32 %v394, %v417
        %v425 = vmul.f32 %v394, %v421
        %v426 = vmul.f32 %v398, %v417
        %v427 = vmul.f32 %v398, %v421
        %v428 = vmul.f32 %v402, %v417
        %v429 = vmul.f32 %v402, %v421
        %v430 = vadd.f32 %v380, %v422
        %v431 = vadd.f32 %v381, %v423
        %v432 = vadd.f32 %v382, %v424
        %v433 = vadd.f32 %v383, %v425
        %v434 = vadd.f32 %v384, %v426
        %v435 = vadd.f32 %v385, %v427
        %v436 = vadd.f32 %v386, %v428
        %v437 = vadd.f32 %v387, %v429
        %438 = vset.pattern.permute.xlu0 3
        %439 = vperm.xlu0 %438, %v255
        %v440 = vpop.permute.xlu0 %439
        %442 = vset.pattern.permute.xlu0 3
        %443 = vperm.xlu0 %442, %v256
        %v444 = vpop.permute.xlu0 %443
        %446 = vset.pattern.permute.xlu0 3
        %447 = vperm.xlu0 %446, %v257
        %v448 = vpop.permute.xlu0 %447
        %450 = vset.pattern.permute.xlu0 3
        %451 = vperm.xlu0 %450, %v258
        %v452 = vpop.permute.xlu0 %451
        %v454 = vlaneseq
        %v455 = vshrl.u32 %v454, 7
        %v456 = vsub.s32 3, %v455
        %v457 = vrot.slane %v254, %v456
        %v458 = vlaneseq
        %v459 = vshrl.u32 %v458, 7
        %v460 = vsub.s32 7, %v459
        %v461 = vrot.slane %v254, %v460
        %v464 = vlaneseq
        %v465 = vshrl.u32 %v464, 7
        %v466 = vsub.s32 3, %v465
        %v467 = vrot.slane %v457, %v466
        %v468 = vlaneseq
        %v469 = vshrl.u32 %v468, 7
        %v470 = vsub.s32 3, %v469
        %v471 = vrot.slane %v461, %v470
        %v472 = vmul.f32 %v440, %v467
        %v473 = vmul.f32 %v440, %v471
        %v474 = vmul.f32 %v444, %v467
        %v475 = vmul.f32 %v444, %v471
        %v476 = vmul.f32 %v448, %v467
        %v477 = vmul.f32 %v448, %v471
        %v478 = vmul.f32 %v452, %v467
        %v479 = vmul.f32 %v452, %v471
        %v480 = vadd.f32 %v430, %v472
        %v481 = vadd.f32 %v431, %v473
        %v482 = vadd.f32 %v432, %v474
        %v483 = vadd.f32 %v433, %v475
        %v484 = vadd.f32 %v434, %v476
        %v485 = vadd.f32 %v435, %v477
        %v486 = vadd.f32 %v436, %v478
        %v487 = vadd.f32 %v437, %v479
        %v488 = vand.u32 2147483647, %v480
        %vm489 = vcmp.le.f32.partialorder %v488, 0.7853982
        %vm490 = vcmp.lt.s32.totalorder %v480, 0
        %v491 = vand.u32 %v480, 2139095040
        %v492 = vshrl.u32 %v491, 23
        %v493 = vsub.s32 %v492, 127
        %v494 = vand.u32 2147483647, %v480
        %v495 = vand.u32 %v494, 8388607
        %v496 = vor.u32 %v495, 8388608
        %v497 = vsub.s32 0, %v496
        %v498 = vadd.s32 %v493, 1
        %vm499 = vcmp.gt.s32.totalorder %v498, 0
        %v500 = vsel %vm499, %v498, 0
        %v501 = vshrl.u32 %v500, 5
        %v502 = vand.u32 %v500, 31
        %v503 = vsub.s32 32, %v502
        %v504 = vshrl.u32 683565275, %v503
        %v505 = vshll.u32 683565275, %v502
        %v506 = vshrl.u32 2475754826, %v503
        %v507 = vor.u32 %v505, %v506
        %v508 = vshll.u32 2475754826, %v502
        %v509 = vshrl.u32 2131351028, %v503
        %v510 = vor.u32 %v508, %v509
        %v511 = vshll.u32 2131351028, %v502
        %v512 = vshrl.u32 2102212464, %v503
        %v513 = vor.u32 %v511, %v512
        %v514 = vshll.u32 2102212464, %v502
        %v515 = vshrl.u32 920167782, %v503
        %v516 = vor.u32 %v514, %v515
        %v517 = vshll.u32 920167782, %v502
        %v518 = vshrl.u32 1326507024, %v503
        %v519 = vor.u32 %v517, %v518
        %vm520 = vcmp.lt.s32.totalorder %v501, 1
        %vm521 = vcmp.lt.s32.totalorder %v501, 2
        %vm522 = vcmp.lt.s32.totalorder %v501, 3
        %vm523 = vcmp.lt.s32.totalorder %v501, 4
        %v524 = vsel %vm520, %v504, %v507
        %v525 = vsel %vm523, %v513, 2102212464
        %v526 = vsel %vm522, %v510, %v525
        %v527 = vsel %vm521, %v524, %v526
        %v528 = vsel %vm520, %v507, %v510
        %v529 = vsel %vm523, %v516, 920167782
        %v530 = vsel %vm522, %v513, %v529
        %v531 = vsel %vm521, %v528, %v530
        %v532 = vsel %vm520, %v510, %v513
        %v533 = vsel %vm523, %v519, 1326507024
        %v534 = vsel %vm522, %v516, %v533
        %v535 = vsel %vm521, %v532, %v534
        %v536 = vshll.u32 %v496, 8
        %v537 = vmul.u32.u64.compose %v536, %v535
        %v538 = vextract.low.u32 %v537
        %v539 = vextract.high.u32 %v537
        %v540 = vmul.u32.u64.compose %v536, %v531
        %v541 = vextract.low.u32 %v540
        %v542 = vextract.high.u32 %v540
        %v543 = vmul.u32 %v536, %v527
        %v544 = vadd.s32 %v539, %v541
        %vm545 = vc.u32 %v539, %v541
        %v546 = vadd.s32 %v542, 1
        %v547 = vsel %vm545, %v546, %v542
        %v548 = vadd.s32 %v543, %v547
        %v549 = vadd.s32 %v548, 536870912
        %v550 = vshrl.u32 %v549, 30
        %v551 = vshll.u32 %v550, 30
        %v552 = vsub.s32 %v548, %v551
        %vm553 = vcmp.lt.s32.totalorder %v552, 0
        %v554 = vsub.s32 0, %v552
        %v555 = vsel %vm553, %v554, %v552
        %v556 = vclz %v555
        %v557 = vsub.s32 %v556, 2
        %vm558 = vcmp.gt.s32.totalorder 0, %v557
        %v559 = vsel %vm558, 0, %v557
        %v560 = vsub.s32 32, %v559
        %v561 = vshll.u32 %v552, %v559
        %v562 = vshrl.u32 %v544, %v560
        %v563 = vor.u32 %v561, %v562
        %v564 = vsub.s32 4294967266, %v559
        %v565 = vadd.s32 %v564, 127
        %v566 = vshll.u32 %v565, 23
        %v567 = vor.u32 4788187, %v566
        %v568 = vand.u32 2147483647, %v567
        %v570 = vcvt.s32.f32 %v563
        %v571 = vmul.f32 %v570, %v568
        %v572 = vxor.u32 %v571, 2147483648
        %v573 = vsel %vm490, %v572, %v571
        %v574 = vsub.s32 4, %v550
        %v575 = vsel %vm490, %v574, %v550
        %v576 = vsel %vm489, %v480, %v573
        %v577 = vsel %vm489, 0, %v575
        %v578 = vcosq.f32.pop %v576
        %v579 = vsinq.f32.pop %v576
        %vm580 = vweird.f32 %v480
        %v581 = vadd.s32 %v577, 3
        %v582 = vand.u32 %v581, 3
        %vm583 = vcmp.lt.s32.totalorder %v582, 2
        %vm584 = vcmp.eq.s32.totalorder %v582, 0
        %v585 = vxor.u32 %v579, 2147483648
        %v586 = vsel %vm584, %v578, %v585
        %vm587 = vcmp.eq.s32.totalorder %v582, 2
        %v588 = vxor.u32 %v578, 2147483648
        %v589 = vsel %vm587, %v588, %v579
        %v590 = vsel %vm583, %v586, %v589
        %v591 = vsel %vm580, nan, %v590
        %v592 = vand.u32 2147483647, %v481
        %vm593 = vcmp.le.f32.partialorder %v592, 0.7853982
        %vm594 = vcmp.lt.s32.totalorder %v481, 0
        %v595 = vand.u32 %v481, 2139095040
        %v596 = vshrl.u32 %v595, 23
        %v597 = vsub.s32 %v596, 127
        %v598 = vand.u32 2147483647, %v481
        %v599 = vand.u32 %v598, 8388607
        %v600 = vor.u32 %v599, 8388608
        %v601 = vsub.s32 0, %v600
        %v602 = vadd.s32 %v597, 1
        %vm603 = vcmp.gt.s32.totalorder %v602, 0
        %v604 = vsel %vm603, %v602, 0
        %v605 = vshrl.u32 %v604, 5
        %v606 = vand.u32 %v604, 31
        %v607 = vsub.s32 32, %v606
        %v608 = vshrl.u32 683565275, %v607
        %v609 = vshll.u32 683565275, %v606
        %v610 = vshrl.u32 2475754826, %v607
        %v611 = vor.u32 %v609, %v610
        %v612 = vshll.u32 2475754826, %v606
        %v613 = vshrl.u32 2131351028, %v607
        %v614 = vor.u32 %v612, %v613
        %v615 = vshll.u32 2131351028, %v606
        %v616 = vshrl.u32 2102212464, %v607
        %v617 = vor.u32 %v615, %v616
        %v618 = vshll.u32 2102212464, %v606
        %v619 = vshrl.u32 920167782, %v607
        %v620 = vor.u32 %v618, %v619
        %v621 = vshll.u32 920167782, %v606
        %v622 = vshrl.u32 1326507024, %v607
        %v623 = vor.u32 %v621, %v622
        %vm624 = vcmp.lt.s32.totalorder %v605, 1
        %vm625 = vcmp.lt.s32.totalorder %v605, 2
        %vm626 = vcmp.lt.s32.totalorder %v605, 3
        %vm627 = vcmp.lt.s32.totalorder %v605, 4
        %v628 = vsel %vm624, %v608, %v611
        %v629 = vsel %vm627, %v617, 2102212464
        %v630 = vsel %vm626, %v614, %v629
        %v631 = vsel %vm625, %v628, %v630
        %v632 = vsel %vm624, %v611, %v614
        %v633 = vsel %vm627, %v620, 920167782
        %v634 = vsel %vm626, %v617, %v633
        %v635 = vsel %vm625, %v632, %v634
        %v636 = vsel %vm624, %v614, %v617
        %v637 = vsel %vm627, %v623, 1326507024
        %v638 = vsel %vm626, %v620, %v637
        %v639 = vsel %vm625, %v636, %v638
        %v640 = vshll.u32 %v600, 8
        %v641 = vmul.u32.u64.compose %v640, %v639
        %v642 = vextract.low.u32 %v641
        %v643 = vextract.high.u32 %v641
        %v644 = vmul.u32.u64.compose %v640, %v635
        %v645 = vextract.low.u32 %v644
        %v646 = vextract.high.u32 %v644
        %v647 = vmul.u32 %v640, %v631
        %v648 = vadd.s32 %v643, %v645
        %vm649 = vc.u32 %v643, %v645
        %v650 = vadd.s32 %v646, 1
        %v651 = vsel %vm649, %v650, %v646
        %v652 = vadd.s32 %v647, %v651
        %v653 = vadd.s32 %v652, 536870912
        %v654 = vshrl.u32 %v653, 30
        %v655 = vshll.u32 %v654, 30
        %v656 = vsub.s32 %v652, %v655
        %vm657 = vcmp.lt.s32.totalorder %v656, 0
        %v658 = vsub.s32 0, %v656
        %v659 = vsel %vm657, %v658, %v656
        %v660 = vclz %v659
        %v661 = vsub.s32 %v660, 2
        %vm662 = vcmp.gt.s32.totalorder 0, %v661
        %v663 = vsel %vm662, 0, %v661
        %v664 = vsub.s32 32, %v663
        %v665 = vshll.u32 %v656, %v663
        %v666 = vshrl.u32 %v648, %v664
        %v667 = vor.u32 %v665, %v666
        %v668 = vsub.s32 4294967266, %v663
        %v669 = vadd.s32 %v668, 127
        %v670 = vshll.u32 %v669, 23
        %v671 = vor.u32 4788187, %v670
        %v672 = vand.u32 2147483647, %v671
        %v674 = vcvt.s32.f32 %v667
        %v675 = vmul.f32 %v674, %v672
        %v676 = vxor.u32 %v675, 2147483648
        %v677 = vsel %vm594, %v676, %v675
        %v678 = vsub.s32 4, %v654
        %v679 = vsel %vm594, %v678, %v654
        %v680 = vsel %vm593, %v481, %v677
        %v681 = vsel %vm593, 0, %v679
        %v682 = vcosq.f32.pop %v680
        %v683 = vsinq.f32.pop %v680
        %vm684 = vweird.f32 %v481
        %v685 = vadd.s32 %v681, 3
        %v686 = vand.u32 %v685, 3
        %vm687 = vcmp.lt.s32.totalorder %v686, 2
        %vm688 = vcmp.eq.s32.totalorder %v686, 0
        %v689 = vxor.u32 %v683, 2147483648
        %v690 = vsel %vm688, %v682, %v689
        %vm691 = vcmp.eq.s32.totalorder %v686, 2
        %v692 = vxor.u32 %v682, 2147483648
        %v693 = vsel %vm691, %v692, %v683
        %v694 = vsel %vm687, %v690, %v693
        %v695 = vsel %vm684, nan, %v694
        %v696 = vand.u32 2147483647, %v482
        %vm697 = vcmp.le.f32.partialorder %v696, 0.7853982
        %vm698 = vcmp.lt.s32.totalorder %v482, 0
        %v699 = vand.u32 %v482, 2139095040
        %v700 = vshrl.u32 %v699, 23
        %v701 = vsub.s32 %v700, 127
        %v702 = vand.u32 2147483647, %v482
        %v703 = vand.u32 %v702, 8388607
        %v704 = vor.u32 %v703, 8388608
        %v705 = vsub.s32 0, %v704
        %v706 = vadd.s32 %v701, 1
        %vm707 = vcmp.gt.s32.totalorder %v706, 0
        %v708 = vsel %vm707, %v706, 0
        %v709 = vshrl.u32 %v708, 5
        %v710 = vand.u32 %v708, 31
        %v711 = vsub.s32 32, %v710
        %v712 = vshrl.u32 683565275, %v711
        %v713 = vshll.u32 683565275, %v710
        %v714 = vshrl.u32 2475754826, %v711
        %v715 = vor.u32 %v713, %v714
        %v716 = vshll.u32 2475754826, %v710
        %v717 = vshrl.u32 2131351028, %v711
        %v718 = vor.u32 %v716, %v717
        %v719 = vshll.u32 2131351028, %v710
        %v720 = vshrl.u32 2102212464, %v711
        %v721 = vor.u32 %v719, %v720
        %v722 = vshll.u32 2102212464, %v710
        %v723 = vshrl.u32 920167782, %v711
        %v724 = vor.u32 %v722, %v723
        %v725 = vshll.u32 920167782, %v710
        %v726 = vshrl.u32 1326507024, %v711
        %v727 = vor.u32 %v725, %v726
        %vm728 = vcmp.lt.s32.totalorder %v709, 1
        %vm729 = vcmp.lt.s32.totalorder %v709, 2
        %vm730 = vcmp.lt.s32.totalorder %v709, 3
        %vm731 = vcmp.lt.s32.totalorder %v709, 4
        %v732 = vsel %vm728, %v712, %v715
        %v733 = vsel %vm731, %v721, 2102212464
        %v734 = vsel %vm730, %v718, %v733
        %v735 = vsel %vm729, %v732, %v734
        %v736 = vsel %vm728, %v715, %v718
        %v737 = vsel %vm731, %v724, 920167782
        %v738 = vsel %vm730, %v721, %v737
        %v739 = vsel %vm729, %v736, %v738
        %v740 = vsel %vm728, %v718, %v721
        %v741 = vsel %vm731, %v727, 1326507024
        %v742 = vsel %vm730, %v724, %v741
        %v743 = vsel %vm729, %v740, %v742
        %v744 = vshll.u32 %v704, 8
        %v745 = vmul.u32.u64.compose %v744, %v743
        %v746 = vextract.low.u32 %v745
        %v747 = vextract.high.u32 %v745
        %v748 = vmul.u32.u64.compose %v744, %v739
        %v749 = vextract.low.u32 %v748
        %v750 = vextract.high.u32 %v748
        %v751 = vmul.u32 %v744, %v735
        %v752 = vadd.s32 %v747, %v749
        %vm753 = vc.u32 %v747, %v749
        %v754 = vadd.s32 %v750, 1
        %v755 = vsel %vm753, %v754, %v750
        %v756 = vadd.s32 %v751, %v755
        %v757 = vadd.s32 %v756, 536870912
        %v758 = vshrl.u32 %v757, 30
        %v759 = vshll.u32 %v758, 30
        %v760 = vsub.s32 %v756, %v759
        %vm761 = vcmp.lt.s32.totalorder %v760, 0
        %v762 = vsub.s32 0, %v760
        %v763 = vsel %vm761, %v762, %v760
        %v764 = vclz %v763
        %v765 = vsub.s32 %v764, 2
        %vm766 = vcmp.gt.s32.totalorder 0, %v765
        %v767 = vsel %vm766, 0, %v765
        %v768 = vsub.s32 32, %v767
        %v769 = vshll.u32 %v760, %v767
        %v770 = vshrl.u32 %v752, %v768
        %v771 = vor.u32 %v769, %v770
        %v772 = vsub.s32 4294967266, %v767
        %v773 = vadd.s32 %v772, 127
        %v774 = vshll.u32 %v773, 23
        %v775 = vor.u32 4788187, %v774
        %v776 = vand.u32 2147483647, %v775
        %v778 = vcvt.s32.f32 %v771
        %v779 = vmul.f32 %v778, %v776
        %v780 = vxor.u32 %v779, 2147483648
        %v781 = vsel %vm698, %v780, %v779
        %v782 = vsub.s32 4, %v758
        %v783 = vsel %vm698, %v782, %v758
        %v784 = vsel %vm697, %v482, %v781
        %v785 = vsel %vm697, 0, %v783
        %v786 = vcosq.f32.pop %v784
        %v787 = vsinq.f32.pop %v784
        %vm788 = vweird.f32 %v482
        %v789 = vadd.s32 %v785, 3
        %v790 = vand.u32 %v789, 3
        %vm791 = vcmp.lt.s32.totalorder %v790, 2
        %vm792 = vcmp.eq.s32.totalorder %v790, 0
        %v793 = vxor.u32 %v787, 2147483648
        %v794 = vsel %vm792, %v786, %v793
        %vm795 = vcmp.eq.s32.totalorder %v790, 2
        %v796 = vxor.u32 %v786, 2147483648
        %v797 = vsel %vm795, %v796, %v787
        %v798 = vsel %vm791, %v794, %v797
        %v799 = vsel %vm788, nan, %v798
        %v800 = vand.u32 2147483647, %v483
        %vm801 = vcmp.le.f32.partialorder %v800, 0.7853982
        %vm802 = vcmp.lt.s32.totalorder %v483, 0
        %v803 = vand.u32 %v483, 2139095040
        %v804 = vshrl.u32 %v803, 23
        %v805 = vsub.s32 %v804, 127
        %v806 = vand.u32 2147483647, %v483
        %v807 = vand.u32 %v806, 8388607
        %v808 = vor.u32 %v807, 8388608
        %v809 = vsub.s32 0, %v808
        %v810 = vadd.s32 %v805, 1
        %vm811 = vcmp.gt.s32.totalorder %v810, 0
        %v812 = vsel %vm811, %v810, 0
        %v813 = vshrl.u32 %v812, 5
        %v814 = vand.u32 %v812, 31
        %v815 = vsub.s32 32, %v814
        %v816 = vshrl.u32 683565275, %v815
        %v817 = vshll.u32 683565275, %v814
        %v818 = vshrl.u32 2475754826, %v815
        %v819 = vor.u32 %v817, %v818
        %v820 = vshll.u32 2475754826, %v814
        %v821 = vshrl.u32 2131351028, %v815
        %v822 = vor.u32 %v820, %v821
        %v823 = vshll.u32 2131351028, %v814
        %v824 = vshrl.u32 2102212464, %v815
        %v825 = vor.u32 %v823, %v824
        %v826 = vshll.u32 2102212464, %v814
        %v827 = vshrl.u32 920167782, %v815
        %v828 = vor.u32 %v826, %v827
        %v829 = vshll.u32 920167782, %v814
        %v830 = vshrl.u32 1326507024, %v815
        %v831 = vor.u32 %v829, %v830
        %vm832 = vcmp.lt.s32.totalorder %v813, 1
        %vm833 = vcmp.lt.s32.totalorder %v813, 2
        %vm834 = vcmp.lt.s32.totalorder %v813, 3
        %vm835 = vcmp.lt.s32.totalorder %v813, 4
        %v836 = vsel %vm832, %v816, %v819
        %v837 = vsel %vm835, %v825, 2102212464
        %v838 = vsel %vm834, %v822, %v837
        %v839 = vsel %vm833, %v836, %v838
        %v840 = vsel %vm832, %v819, %v822
        %v841 = vsel %vm835, %v828, 920167782
        %v842 = vsel %vm834, %v825, %v841
        %v843 = vsel %vm833, %v840, %v842
        %v844 = vsel %vm832, %v822, %v825
        %v845 = vsel %vm835, %v831, 1326507024
        %v846 = vsel %vm834, %v828, %v845
        %v847 = vsel %vm833, %v844, %v846
        %v848 = vshll.u32 %v808, 8
        %v849 = vmul.u32.u64.compose %v848, %v847
        %v850 = vextract.low.u32 %v849
        %v851 = vextract.high.u32 %v849
        %v852 = vmul.u32.u64.compose %v848, %v843
        %v853 = vextract.low.u32 %v852
        %v854 = vextract.high.u32 %v852
        %v855 = vmul.u32 %v848, %v839
        %v856 = vadd.s32 %v851, %v853
        %vm857 = vc.u32 %v851, %v853
        %v858 = vadd.s32 %v854, 1
        %v859 = vsel %vm857, %v858, %v854
        %v860 = vadd.s32 %v855, %v859
        %v861 = vadd.s32 %v860, 536870912
        %v862 = vshrl.u32 %v861, 30
        %v863 = vshll.u32 %v862, 30
        %v864 = vsub.s32 %v860, %v863
        %vm865 = vcmp.lt.s32.totalorder %v864, 0
        %v866 = vsub.s32 0, %v864
        %v867 = vsel %vm865, %v866, %v864
        %v868 = vclz %v867
        %v869 = vsub.s32 %v868, 2
        %vm870 = vcmp.gt.s32.totalorder 0, %v869
        %v871 = vsel %vm870, 0, %v869
        %v872 = vsub.s32 32, %v871
        %v873 = vshll.u32 %v864, %v871
        %v874 = vshrl.u32 %v856, %v872
        %v875 = vor.u32 %v873, %v874
        %v876 = vsub.s32 4294967266, %v871
        %v877 = vadd.s32 %v876, 127
        %v878 = vshll.u32 %v877, 23
        %v879 = vor.u32 4788187, %v878
        %v880 = vand.u32 2147483647, %v879
        %v882 = vcvt.s32.f32 %v875
        %v883 = vmul.f32 %v882, %v880
        %v884 = vxor.u32 %v883, 2147483648
        %v885 = vsel %vm802, %v884, %v883
        %v886 = vsub.s32 4, %v862
        %v887 = vsel %vm802, %v886, %v862
        %v888 = vsel %vm801, %v483, %v885
        %v889 = vsel %vm801, 0, %v887
        %v890 = vcosq.f32.pop %v888
        %v891 = vsinq.f32.pop %v888
        %vm892 = vweird.f32 %v483
        %v893 = vadd.s32 %v889, 3
        %v894 = vand.u32 %v893, 3
        %vm895 = vcmp.lt.s32.totalorder %v894, 2
        %vm896 = vcmp.eq.s32.totalorder %v894, 0
        %v897 = vxor.u32 %v891, 2147483648
        %v898 = vsel %vm896, %v890, %v897
        %vm899 = vcmp.eq.s32.totalorder %v894, 2
        %v900 = vxor.u32 %v890, 2147483648
        %v901 = vsel %vm899, %v900, %v891
        %v902 = vsel %vm895, %v898, %v901
        %v903 = vsel %vm892, nan, %v902
        %v904 = vand.u32 2147483647, %v484
        %vm905 = vcmp.le.f32.partialorder %v904, 0.7853982
        %vm906 = vcmp.lt.s32.totalorder %v484, 0
        %v907 = vand.u32 %v484, 2139095040
        %v908 = vshrl.u32 %v907, 23
        %v909 = vsub.s32 %v908, 127
        %v910 = vand.u32 2147483647, %v484
        %v911 = vand.u32 %v910, 8388607
        %v912 = vor.u32 %v911, 8388608
        %v913 = vsub.s32 0, %v912
        %v914 = vadd.s32 %v909, 1
        %vm915 = vcmp.gt.s32.totalorder %v914, 0
        %v916 = vsel %vm915, %v914, 0
        %v917 = vshrl.u32 %v916, 5
        %v918 = vand.u32 %v916, 31
        %v919 = vsub.s32 32, %v918
        %v920 = vshrl.u32 683565275, %v919
        %v921 = vshll.u32 683565275, %v918
        %v922 = vshrl.u32 2475754826, %v919
        %v923 = vor.u32 %v921, %v922
        %v924 = vshll.u32 2475754826, %v918
        %v925 = vshrl.u32 2131351028, %v919
        %v926 = vor.u32 %v924, %v925
        %v927 = vshll.u32 2131351028, %v918
        %v928 = vshrl.u32 2102212464, %v919
        %v929 = vor.u32 %v927, %v928
        %v930 = vshll.u32 2102212464, %v918
        %v931 = vshrl.u32 920167782, %v919
        %v932 = vor.u32 %v930, %v931
        %v933 = vshll.u32 920167782, %v918
        %v934 = vshrl.u32 1326507024, %v919
        %v935 = vor.u32 %v933, %v934
        %vm936 = vcmp.lt.s32.totalorder %v917, 1
        %vm937 = vcmp.lt.s32.totalorder %v917, 2
        %vm938 = vcmp.lt.s32.totalorder %v917, 3
        %vm939 = vcmp.lt.s32.totalorder %v917, 4
        %v940 = vsel %vm936, %v920, %v923
        %v941 = vsel %vm939, %v929, 2102212464
        %v942 = vsel %vm938, %v926, %v941
        %v943 = vsel %vm937, %v940, %v942
        %v944 = vsel %vm936, %v923, %v926
        %v945 = vsel %vm939, %v932, 920167782
        %v946 = vsel %vm938, %v929, %v945
        %v947 = vsel %vm937, %v944, %v946
        %v948 = vsel %vm936, %v926, %v929
        %v949 = vsel %vm939, %v935, 1326507024
        %v950 = vsel %vm938, %v932, %v949
        %v951 = vsel %vm937, %v948, %v950
        %v952 = vshll.u32 %v912, 8
        %v953 = vmul.u32.u64.compose %v952, %v951
        %v954 = vextract.low.u32 %v953
        %v955 = vextract.high.u32 %v953
        %v956 = vmul.u32.u64.compose %v952, %v947
        %v957 = vextract.low.u32 %v956
        %v958 = vextract.high.u32 %v956
        %v959 = vmul.u32 %v952, %v943
        %v960 = vadd.s32 %v955, %v957
        %vm961 = vc.u32 %v955, %v957
        %v962 = vadd.s32 %v958, 1
        %v963 = vsel %vm961, %v962, %v958
        %v964 = vadd.s32 %v959, %v963
        %v965 = vadd.s32 %v964, 536870912
        %v966 = vshrl.u32 %v965, 30
        %v967 = vshll.u32 %v966, 30
        %v968 = vsub.s32 %v964, %v967
        %vm969 = vcmp.lt.s32.totalorder %v968, 0
        %v970 = vsub.s32 0, %v968
        %v971 = vsel %vm969, %v970, %v968
        %v972 = vclz %v971
        %v973 = vsub.s32 %v972, 2
        %vm974 = vcmp.gt.s32.totalorder 0, %v973
        %v975 = vsel %vm974, 0, %v973
        %v976 = vsub.s32 32, %v975
        %v977 = vshll.u32 %v968, %v975
        %v978 = vshrl.u32 %v960, %v976
        %v979 = vor.u32 %v977, %v978
        %v980 = vsub.s32 4294967266, %v975
        %v981 = vadd.s32 %v980, 127
        %v982 = vshll.u32 %v981, 23
        %v983 = vor.u32 4788187, %v982
        %v984 = vand.u32 2147483647, %v983
        %v986 = vcvt.s32.f32 %v979
        %v987 = vmul.f32 %v986, %v984
        %v988 = vxor.u32 %v987, 2147483648
        %v989 = vsel %vm906, %v988, %v987
        %v990 = vsub.s32 4, %v966
        %v991 = vsel %vm906, %v990, %v966
        %v992 = vsel %vm905, %v484, %v989
        %v993 = vsel %vm905, 0, %v991
        %v994 = vcosq.f32.pop %v992
        %v995 = vsinq.f32.pop %v992
        %vm996 = vweird.f32 %v484
        %v997 = vadd.s32 %v993, 3
        %v998 = vand.u32 %v997, 3
        %vm999 = vcmp.lt.s32.totalorder %v998, 2
        %vm1000 = vcmp.eq.s32.totalorder %v998, 0
        %v1001 = vxor.u32 %v995, 2147483648
        %v1002 = vsel %vm1000, %v994, %v1001
        %vm1003 = vcmp.eq.s32.totalorder %v998, 2
        %v1004 = vxor.u32 %v994, 2147483648
        %v1005 = vsel %vm1003, %v1004, %v995
        %v1006 = vsel %vm999, %v1002, %v1005
        %v1007 = vsel %vm996, nan, %v1006
        %v1008 = vand.u32 2147483647, %v485
        %vm1009 = vcmp.le.f32.partialorder %v1008, 0.7853982
        %vm1010 = vcmp.lt.s32.totalorder %v485, 0
        %v1011 = vand.u32 %v485, 2139095040
        %v1012 = vshrl.u32 %v1011, 23
        %v1013 = vsub.s32 %v1012, 127
        %v1014 = vand.u32 2147483647, %v485
        %v1015 = vand.u32 %v1014, 8388607
        %v1016 = vor.u32 %v1015, 8388608
        %v1017 = vsub.s32 0, %v1016
        %v1018 = vadd.s32 %v1013, 1
        %vm1019 = vcmp.gt.s32.totalorder %v1018, 0
        %v1020 = vsel %vm1019, %v1018, 0
        %v1021 = vshrl.u32 %v1020, 5
        %v1022 = vand.u32 %v1020, 31
        %v1023 = vsub.s32 32, %v1022
        %v1024 = vshrl.u32 683565275, %v1023
        %v1025 = vshll.u32 683565275, %v1022
        %v1026 = vshrl.u32 2475754826, %v1023
        %v1027 = vor.u32 %v1025, %v1026
        %v1028 = vshll.u32 2475754826, %v1022
        %v1029 = vshrl.u32 2131351028, %v1023
        %v1030 = vor.u32 %v1028, %v1029
        %v1031 = vshll.u32 2131351028, %v1022
        %v1032 = vshrl.u32 2102212464, %v1023
        %v1033 = vor.u32 %v1031, %v1032
        %v1034 = vshll.u32 2102212464, %v1022
        %v1035 = vshrl.u32 920167782, %v1023
        %v1036 = vor.u32 %v1034, %v1035
        %v1037 = vshll.u32 920167782, %v1022
        %v1038 = vshrl.u32 1326507024, %v1023
        %v1039 = vor.u32 %v1037, %v1038
        %vm1040 = vcmp.lt.s32.totalorder %v1021, 1
        %vm1041 = vcmp.lt.s32.totalorder %v1021, 2
        %vm1042 = vcmp.lt.s32.totalorder %v1021, 3
        %vm1043 = vcmp.lt.s32.totalorder %v1021, 4
        %v1044 = vsel %vm1040, %v1024, %v1027
        %v1045 = vsel %vm1043, %v1033, 2102212464
        %v1046 = vsel %vm1042, %v1030, %v1045
        %v1047 = vsel %vm1041, %v1044, %v1046
        %v1048 = vsel %vm1040, %v1027, %v1030
        %v1049 = vsel %vm1043, %v1036, 920167782
        %v1050 = vsel %vm1042, %v1033, %v1049
        %v1051 = vsel %vm1041, %v1048, %v1050
        %v1052 = vsel %vm1040, %v1030, %v1033
        %v1053 = vsel %vm1043, %v1039, 1326507024
        %v1054 = vsel %vm1042, %v1036, %v1053
        %v1055 = vsel %vm1041, %v1052, %v1054
        %v1056 = vshll.u32 %v1016, 8
        %v1057 = vmul.u32.u64.compose %v1056, %v1055
        %v1058 = vextract.low.u32 %v1057
        %v1059 = vextract.high.u32 %v1057
        %v1060 = vmul.u32.u64.compose %v1056, %v1051
        %v1061 = vextract.low.u32 %v1060
        %v1062 = vextract.high.u32 %v1060
        %v1063 = vmul.u32 %v1056, %v1047
        %v1064 = vadd.s32 %v1059, %v1061
        %vm1065 = vc.u32 %v1059, %v1061
        %v1066 = vadd.s32 %v1062, 1
        %v1067 = vsel %vm1065, %v1066, %v1062
        %v1068 = vadd.s32 %v1063, %v1067
        %v1069 = vadd.s32 %v1068, 536870912
        %v1070 = vshrl.u32 %v1069, 30
        %v1071 = vshll.u32 %v1070, 30
        %v1072 = vsub.s32 %v1068, %v1071
        %vm1073 = vcmp.lt.s32.totalorder %v1072, 0
        %v1074 = vsub.s32 0, %v1072
        %v1075 = vsel %vm1073, %v1074, %v1072
        %v1076 = vclz %v1075
        %v1077 = vsub.s32 %v1076, 2
        %vm1078 = vcmp.gt.s32.totalorder 0, %v1077
        %v1079 = vsel %vm1078, 0, %v1077
        %v1080 = vsub.s32 32, %v1079
        %v1081 = vshll.u32 %v1072, %v1079
        %v1082 = vshrl.u32 %v1064, %v1080
        %v1083 = vor.u32 %v1081, %v1082
        %v1084 = vsub.s32 4294967266, %v1079
        %v1085 = vadd.s32 %v1084, 127
        %v1086 = vshll.u32 %v1085, 23
        %v1087 = vor.u32 4788187, %v1086
        %v1088 = vand.u32 2147483647, %v1087
        %v1090 = vcvt.s32.f32 %v1083
        %v1091 = vmul.f32 %v1090, %v1088
        %v1092 = vxor.u32 %v1091, 2147483648
        %v1093 = vsel %vm1010, %v1092, %v1091
        %v1094 = vsub.s32 4, %v1070
        %v1095 = vsel %vm1010, %v1094, %v1070
        %v1096 = vsel %vm1009, %v485, %v1093
        %v1097 = vsel %vm1009, 0, %v1095
        %v1098 = vcosq.f32.pop %v1096
        %v1099 = vsinq.f32.pop %v1096
        %vm1100 = vweird.f32 %v485
        %v1101 = vadd.s32 %v1097, 3
        %v1102 = vand.u32 %v1101, 3
        %vm1103 = vcmp.lt.s32.totalorder %v1102, 2
        %vm1104 = vcmp.eq.s32.totalorder %v1102, 0
        %v1105 = vxor.u32 %v1099, 2147483648
        %v1106 = vsel %vm1104, %v1098, %v1105
        %vm1107 = vcmp.eq.s32.totalorder %v1102, 2
        %v1108 = vxor.u32 %v1098, 2147483648
        %v1109 = vsel %vm1107, %v1108, %v1099
        %v1110 = vsel %vm1103, %v1106, %v1109
        %v1111 = vsel %vm1100, nan, %v1110
        %v1112 = vand.u32 2147483647, %v486
        %vm1113 = vcmp.le.f32.partialorder %v1112, 0.7853982
        %vm1114 = vcmp.lt.s32.totalorder %v486, 0
        %v1115 = vand.u32 %v486, 2139095040
        %v1116 = vshrl.u32 %v1115, 23
        %v1117 = vsub.s32 %v1116, 127
        %v1118 = vand.u32 2147483647, %v486
        %v1119 = vand.u32 %v1118, 8388607
        %v1120 = vor.u32 %v1119, 8388608
        %v1121 = vsub.s32 0, %v1120
        %v1122 = vadd.s32 %v1117, 1
        %vm1123 = vcmp.gt.s32.totalorder %v1122, 0
        %v1124 = vsel %vm1123, %v1122, 0
        %v1125 = vshrl.u32 %v1124, 5
        %v1126 = vand.u32 %v1124, 31
        %v1127 = vsub.s32 32, %v1126
        %v1128 = vshrl.u32 683565275, %v1127
        %v1129 = vshll.u32 683565275, %v1126
        %v1130 = vshrl.u32 2475754826, %v1127
        %v1131 = vor.u32 %v1129, %v1130
        %v1132 = vshll.u32 2475754826, %v1126
        %v1133 = vshrl.u32 2131351028, %v1127
        %v1134 = vor.u32 %v1132, %v1133
        %v1135 = vshll.u32 2131351028, %v1126
        %v1136 = vshrl.u32 2102212464, %v1127
        %v1137 = vor.u32 %v1135, %v1136
        %v1138 = vshll.u32 2102212464, %v1126
        %v1139 = vshrl.u32 920167782, %v1127
        %v1140 = vor.u32 %v1138, %v1139
        %v1141 = vshll.u32 920167782, %v1126
        %v1142 = vshrl.u32 1326507024, %v1127
        %v1143 = vor.u32 %v1141, %v1142
        %vm1144 = vcmp.lt.s32.totalorder %v1125, 1
        %vm1145 = vcmp.lt.s32.totalorder %v1125, 2
        %vm1146 = vcmp.lt.s32.totalorder %v1125, 3
        %vm1147 = vcmp.lt.s32.totalorder %v1125, 4
        %v1148 = vsel %vm1144, %v1128, %v1131
        %v1149 = vsel %vm1147, %v1137, 2102212464
        %v1150 = vsel %vm1146, %v1134, %v1149
        %v1151 = vsel %vm1145, %v1148, %v1150
        %v1152 = vsel %vm1144, %v1131, %v1134
        %v1153 = vsel %vm1147, %v1140, 920167782
        %v1154 = vsel %vm1146, %v1137, %v1153
        %v1155 = vsel %vm1145, %v1152, %v1154
        %v1156 = vsel %vm1144, %v1134, %v1137
        %v1157 = vsel %vm1147, %v1143, 1326507024
        %v1158 = vsel %vm1146, %v1140, %v1157
        %v1159 = vsel %vm1145, %v1156, %v1158
        %v1160 = vshll.u32 %v1120, 8
        %v1161 = vmul.u32.u64.compose %v1160, %v1159
        %v1162 = vextract.low.u32 %v1161
        %v1163 = vextract.high.u32 %v1161
        %v1164 = vmul.u32.u64.compose %v1160, %v1155
        %v1165 = vextract.low.u32 %v1164
        %v1166 = vextract.high.u32 %v1164
        %v1167 = vmul.u32 %v1160, %v1151
        %v1168 = vadd.s32 %v1163, %v1165
        %vm1169 = vc.u32 %v1163, %v1165
        %v1170 = vadd.s32 %v1166, 1
        %v1171 = vsel %vm1169, %v1170, %v1166
        %v1172 = vadd.s32 %v1167, %v1171
        %v1173 = vadd.s32 %v1172, 536870912
        %v1174 = vshrl.u32 %v1173, 30
        %v1175 = vshll.u32 %v1174, 30
        %v1176 = vsub.s32 %v1172, %v1175
        %vm1177 = vcmp.lt.s32.totalorder %v1176, 0
        %v1178 = vsub.s32 0, %v1176
        %v1179 = vsel %vm1177, %v1178, %v1176
        %v1180 = vclz %v1179
        %v1181 = vsub.s32 %v1180, 2
        %vm1182 = vcmp.gt.s32.totalorder 0, %v1181
        %v1183 = vsel %vm1182, 0, %v1181
        %v1184 = vsub.s32 32, %v1183
        %v1185 = vshll.u32 %v1176, %v1183
        %v1186 = vshrl.u32 %v1168, %v1184
        %v1187 = vor.u32 %v1185, %v1186
        %v1188 = vsub.s32 4294967266, %v1183
        %v1189 = vadd.s32 %v1188, 127
        %v1190 = vshll.u32 %v1189, 23
        %v1191 = vor.u32 4788187, %v1190
        %v1192 = vand.u32 2147483647, %v1191
        %v1194 = vcvt.s32.f32 %v1187
        %v1195 = vmul.f32 %v1194, %v1192
        %v1196 = vxor.u32 %v1195, 2147483648
        %v1197 = vsel %vm1114, %v1196, %v1195
        %v1198 = vsub.s32 4, %v1174
        %v1199 = vsel %vm1114, %v1198, %v1174
        %v1200 = vsel %vm1113, %v486, %v1197
        %v1201 = vsel %vm1113, 0, %v1199
        %v1202 = vcosq.f32.pop %v1200
        %v1203 = vsinq.f32.pop %v1200
        %vm1204 = vweird.f32 %v486
        %v1205 = vadd.s32 %v1201, 3
        %v1206 = vand.u32 %v1205, 3
        %vm1207 = vcmp.lt.s32.totalorder %v1206, 2
        %vm1208 = vcmp.eq.s32.totalorder %v1206, 0
        %v1209 = vxor.u32 %v1203, 2147483648
        %v1210 = vsel %vm1208, %v1202, %v1209
        %vm1211 = vcmp.eq.s32.totalorder %v1206, 2
        %v1212 = vxor.u32 %v1202, 2147483648
        %v1213 = vsel %vm1211, %v1212, %v1203
        %v1214 = vsel %vm1207, %v1210, %v1213
        %v1215 = vsel %vm1204, nan, %v1214
        %v1216 = vand.u32 2147483647, %v487
        %vm1217 = vcmp.le.f32.partialorder %v1216, 0.7853982
        %vm1218 = vcmp.lt.s32.totalorder %v487, 0
        %v1219 = vand.u32 %v487, 2139095040
        %v1220 = vshrl.u32 %v1219, 23
        %v1221 = vsub.s32 %v1220, 127
        %v1222 = vand.u32 2147483647, %v487
        %v1223 = vand.u32 %v1222, 8388607
        %v1224 = vor.u32 %v1223, 8388608
        %v1225 = vsub.s32 0, %v1224
        %v1226 = vadd.s32 %v1221, 1
        %vm1227 = vcmp.gt.s32.totalorder %v1226, 0
        %v1228 = vsel %vm1227, %v1226, 0
        %v1229 = vshrl.u32 %v1228, 5
        %v1230 = vand.u32 %v1228, 31
        %v1231 = vsub.s32 32, %v1230
        %v1232 = vshrl.u32 683565275, %v1231
        %v1233 = vshll.u32 683565275, %v1230
        %v1234 = vshrl.u32 2475754826, %v1231
        %v1235 = vor.u32 %v1233, %v1234
        %v1236 = vshll.u32 2475754826, %v1230
        %v1237 = vshrl.u32 2131351028, %v1231
        %v1238 = vor.u32 %v1236, %v1237
        %v1239 = vshll.u32 2131351028, %v1230
        %v1240 = vshrl.u32 2102212464, %v1231
        %v1241 = vor.u32 %v1239, %v1240
        %v1242 = vshll.u32 2102212464, %v1230
        %v1243 = vshrl.u32 920167782, %v1231
        %v1244 = vor.u32 %v1242, %v1243
        %v1245 = vshll.u32 920167782, %v1230
        %v1246 = vshrl.u32 1326507024, %v1231
        %v1247 = vor.u32 %v1245, %v1246
        %vm1248 = vcmp.lt.s32.totalorder %v1229, 1
        %vm1249 = vcmp.lt.s32.totalorder %v1229, 2
        %vm1250 = vcmp.lt.s32.totalorder %v1229, 3
        %vm1251 = vcmp.lt.s32.totalorder %v1229, 4
        %v1252 = vsel %vm1248, %v1232, %v1235
        %v1253 = vsel %vm1251, %v1241, 2102212464
        %v1254 = vsel %vm1250, %v1238, %v1253
        %v1255 = vsel %vm1249, %v1252, %v1254
        %v1256 = vsel %vm1248, %v1235, %v1238
        %v1257 = vsel %vm1251, %v1244, 920167782
        %v1258 = vsel %vm1250, %v1241, %v1257
        %v1259 = vsel %vm1249, %v1256, %v1258
        %v1260 = vsel %vm1248, %v1238, %v1241
        %v1261 = vsel %vm1251, %v1247, 1326507024
        %v1262 = vsel %vm1250, %v1244, %v1261
        %v1263 = vsel %vm1249, %v1260, %v1262
        %v1264 = vshll.u32 %v1224, 8
        %v1265 = vmul.u32.u64.compose %v1264, %v1263
        %v1266 = vextract.low.u32 %v1265
        %v1267 = vextract.high.u32 %v1265
        %v1268 = vmul.u32.u64.compose %v1264, %v1259
        %v1269 = vextract.low.u32 %v1268
        %v1270 = vextract.high.u32 %v1268
        %v1271 = vmul.u32 %v1264, %v1255
        %v1272 = vadd.s32 %v1267, %v1269
        %vm1273 = vc.u32 %v1267, %v1269
        %v1274 = vadd.s32 %v1270, 1
        %v1275 = vsel %vm1273, %v1274, %v1270
        %v1276 = vadd.s32 %v1271, %v1275
        %v1277 = vadd.s32 %v1276, 536870912
        %v1278 = vshrl.u32 %v1277, 30
        %v1279 = vshll.u32 %v1278, 30
        %v1280 = vsub.s32 %v1276, %v1279
        %vm1281 = vcmp.lt.s32.totalorder %v1280, 0
        %v1282 = vsub.s32 0, %v1280
        %v1283 = vsel %vm1281, %v1282, %v1280
        %v1284 = vclz %v1283
        %v1285 = vsub.s32 %v1284, 2
        %vm1286 = vcmp.gt.s32.totalorder 0, %v1285
        %v1287 = vsel %vm1286, 0, %v1285
        %v1288 = vsub.s32 32, %v1287
        %v1289 = vshll.u32 %v1280, %v1287
        %v1290 = vshrl.u32 %v1272, %v1288
        %v1291 = vor.u32 %v1289, %v1290
        %v1292 = vsub.s32 4294967266, %v1287
        %v1293 = vadd.s32 %v1292, 127
        %v1294 = vshll.u32 %v1293, 23
        %v1295 = vor.u32 4788187, %v1294
        %v1296 = vand.u32 2147483647, %v1295
        %v1298 = vcvt.s32.f32 %v1291
        %v1299 = vmul.f32 %v1298, %v1296
        %v1300 = vxor.u32 %v1299, 2147483648
        %v1301 = vsel %vm1218, %v1300, %v1299
        %v1302 = vsub.s32 4, %v1278
        %v1303 = vsel %vm1218, %v1302, %v1278
        %v1304 = vsel %vm1217, %v487, %v1301
        %v1305 = vsel %vm1217, 0, %v1303
        %v1306 = vcosq.f32.pop %v1304
        %v1307 = vsinq.f32.pop %v1304
        %vm1308 = vweird.f32 %v487
        %v1309 = vadd.s32 %v1305, 3
        %v1310 = vand.u32 %v1309, 3
        %vm1311 = vcmp.lt.s32.totalorder %v1310, 2
        %vm1312 = vcmp.eq.s32.totalorder %v1310, 0
        %v1313 = vxor.u32 %v1307, 2147483648
        %v1314 = vsel %vm1312, %v1306, %v1313
        %vm1315 = vcmp.eq.s32.totalorder %v1310, 2
        %v1316 = vxor.u32 %v1306, 2147483648
        %v1317 = vsel %vm1315, %v1316, %v1307
        %v1318 = vsel %vm1311, %v1314, %v1317
        %v1319 = vsel %vm1308, nan, %v1318
        %v1320 = vld [vmem:[%s3] sm:$0xff]
        %v1321 = vld [vmem:[%s3 + $0x8] sm:$0xff]
        %v1322 = vld [vmem:[%s3 + $0x10] sm:$0xff]
        %v1323 = vld [vmem:[%s3 + $0x18] sm:$0xff]
        %v1324 = vld [vmem:[%s4] sm:$0xff]
        %v1325 = vld [vmem:[%s4 + $0x8] sm:$0xff]
        %v1326 = vld [vmem:[%s4 + $0x10] sm:$0xff]
        %v1327 = vld [vmem:[%s4 + $0x18] sm:$0xff]
        %1329 = vset.pattern.permute.xlu0 0
        %1330 = vperm.xlu0 %1329, %v1324
        %v1331 = vpop.permute.xlu0 %1330
        %1334 = vset.pattern.permute.xlu0 0
        %1335 = vperm.xlu0 %1334, %v1325
        %v1336 = vpop.permute.xlu0 %1335
        %1339 = vset.pattern.permute.xlu0 0
        %1340 = vperm.xlu0 %1339, %v1326
        %v1341 = vpop.permute.xlu0 %1340
        %1344 = vset.pattern.permute.xlu0 0
        %1345 = vperm.xlu0 %1344, %v1327
        %v1346 = vpop.permute.xlu0 %1345
        %vm1348 = vcmask 261120
        %v1350 = vsel %vm1348, %v1320, 0
        %v1353 = vsel %vm1348, %v1321, 0
        %v1356 = vsel %vm1348, %v1322, 0
        %v1359 = vsel %vm1348, %v1323, 0
        %1361 = vmatprep.subr.mxu0 %v695
        %1362 = vmatpush1.msra.mxu0 %v591
        %1363 = vmatprep.subr.mxu0 %v903
        %1364 = vmatpush1.msra.mxu0 %v799
        %1365 = vmatprep.subr.mxu0 %v1111
        %1366 = vmatpush1.msra.mxu0 %v1007
        %1367 = vmatprep.subr.mxu0 %v1319
        %1368 = vmatpush1.msra.mxu0 %v1215
        %1369 = vmatprep.subr.mxu0 0.0
        %1370 = vmatpush1.msra.mxu0 0.0
        %1371 = vmatprep.subr.mxu0 0.0
        %1372 = vmatpush1.msra.mxu0 0.0
        %1373 = vmatprep.subr.mxu0 0.0
        %1374 = vmatpush1.msra.mxu0 0.0
        %1375 = vmatprep.subr.mxu0 0.0
        %1376 = vmatpush1.msra.mxu0 0.0
        %1377 = vmatprep.subr.mxu0 0.0
        %1378 = vmatpush1.msra.mxu0 0.0
        %1379 = vmatprep.subr.mxu0 0.0
        %1380 = vmatpush1.msra.mxu0 0.0
        %1381 = vmatprep.subr.mxu0 0.0
        %1382 = vmatpush1.msra.mxu0 0.0
        %1383 = vmatprep.subr.mxu0 0.0
        %1384 = vmatpush1.msra.mxu0 0.0
        %1385 = vmatprep.subr.mxu0 0.0
        %1386 = vmatpush1.msra.mxu0 0.0
        %1387 = vmatprep.subr.mxu0 0.0
        %1388 = vmatpush1.msra.mxu0 0.0
        %1389 = vmatprep.subr.mxu0 0.0
        %1390 = vmatpush1.msra.mxu0 0.0
        %1391 = vmatprep.subr.mxu0 0.0
        %1392 = vmatpush1.msra.mxu0 0.0
        %1393 = vmatprep.subr.mxu0 0.0
        %1394 = vmatpush1.msra.mxu0 0.0
        %1395 = vmatprep.subr.mxu0 0.0
        %1396 = vmatpush1.msra.mxu0 0.0
        %1397 = vmatprep.subr.mxu0 0.0
        %1398 = vmatpush1.msra.mxu0 0.0
        %1399 = vmatprep.subr.mxu0 0.0
        %1400 = vmatpush1.msra.mxu0 0.0
        %1401 = vmatprep.subr.mxu0 0.0
        %1402 = vmatpush1.msra.mxu0 0.0
        %1403 = vmatprep.subr.mxu0 0.0
        %1404 = vmatpush1.msra.mxu0 0.0
        %1405 = vmatprep.subr.mxu0 0.0
        %1406 = vmatpush1.msra.mxu0 0.0
        %1407 = vmatprep.subr.mxu0 0.0
        %1408 = vmatpush1.msra.mxu0 0.0
        %1409 = vmatprep.subr.mxu0 0.0
        %1410 = vmatpush1.msra.mxu0 0.0
        %1411 = vmatprep.subr.mxu0 0.0
        %1412 = vmatpush1.msra.mxu0 0.0
        %1413 = vmatprep.subr.mxu0 0.0
        %1414 = vmatpush1.msra.mxu0 0.0
        %1415 = vmatprep.subr.mxu0 0.0
        %1416 = vmatpush1.msra.mxu0 0.0
        %1417 = vmatprep.subr.mxu0 0.0
        %1418 = vmatpush1.msra.mxu0 0.0
        %1419 = vmatprep.subr.mxu0 0.0
        %1420 = vmatpush1.msra.mxu0 0.0
        %1421 = vmatprep.subr.mxu0 0.0
        %1422 = vmatpush1.msra.mxu0 0.0
        %1423 = vmatprep.subr.mxu0 0.0
        %1424 = vmatpush1.msra.mxu0 0.0
        %1425 = vmatprep.mubr.f32.mxu0 0.0
        %1426 = vmatmul.mubr.f32.gmra.mrb[0].mxu0 %v1350
        %v1427 = vpop.f32.mrb[0].mxu0
        %v1428 = vadd.f32 %v1331, %v1427
        %v1429 = vpop.f32.mrb[0].mxu0
        %v1430 = vadd.f32 %v1331, %v1429
        %1431 = vmatprep.mubr.f32.mxu0 0.0
        %1432 = vmatmul.mubr.f32.gmra.mrb[0].mxu0 %v1353
        %v1433 = vpop.f32.mrb[0].mxu0
        %v1434 = vadd.f32 %v1336, %v1433
        %v1435 = vpop.f32.mrb[0].mxu0
        %v1436 = vadd.f32 %v1336, %v1435
        %1437 = vmatprep.mubr.f32.mxu0 0.0
        %1438 = vmatmul.mubr.f32.gmra.mrb[0].mxu0 %v1356
        %v1439 = vpop.f32.mrb[0].mxu0
        %v1440 = vadd.f32 %v1341, %v1439
        %v1441 = vpop.f32.mrb[0].mxu0
        %v1442 = vadd.f32 %v1341, %v1441
        %1443 = vmatprep.mubr.f32.mxu0 0.0
        %1444 = vmatmul.mubr.f32.gmra.mrb[0].mxu0 %v1359
        %v1445 = vpop.f32.mrb[0].mxu0
        %v1446 = vadd.f32 %v1346, %v1445
        %v1447 = vpop.f32.mrb[0].mxu0
        %v1448 = vadd.f32 %v1346, %v1447
        %1449 = vdwg.mxu0
        %vm1450 = vcmp.ge.f32.partialorder %v1428, 0.0
        %vm1451 = vcmp.ge.f32.partialorder %v1430, 0.0
        %vm1452 = vcmp.ge.f32.partialorder %v1434, 0.0
        %vm1453 = vcmp.ge.f32.partialorder %v1436, 0.0
        %vm1454 = vcmp.ge.f32.partialorder %v1440, 0.0
        %vm1455 = vcmp.ge.f32.partialorder %v1442, 0.0
        %vm1456 = vcmp.ge.f32.partialorder %v1446, 0.0
        %vm1457 = vcmp.ge.f32.partialorder %v1448, 0.0
        %v1458 = vmul.f32 %v1428, 0.2
        %v1459 = vmul.f32 %v1430, 0.2
        %v1460 = vmul.f32 %v1434, 0.2
        %v1461 = vmul.f32 %v1436, 0.2
        %v1462 = vmul.f32 %v1440, 0.2
        %v1463 = vmul.f32 %v1442, 0.2
        %v1464 = vmul.f32 %v1446, 0.2
        %v1465 = vmul.f32 %v1448, 0.2
        %v1466 = vsel %vm1450, %v1428, %v1458
        %v1467 = vsel %vm1451, %v1430, %v1459
        %v1468 = vsel %vm1452, %v1434, %v1460
        %v1469 = vsel %vm1453, %v1436, %v1461
        %v1470 = vsel %vm1454, %v1440, %v1462
        %v1471 = vsel %vm1455, %v1442, %v1463
        %v1472 = vsel %vm1456, %v1446, %v1464
        %v1473 = vsel %vm1457, %v1448, %v1465
        %1474 = vst [vmem:[%s242] sm:$0xff] %v1466
        %1475 = vst [vmem:[%s242 + $0x8] sm:$0xff] %v1467
        %1476 = vst [vmem:[%s242 + $0x10] sm:$0xff] %v1468
        %1477 = vst [vmem:[%s242 + $0x18] sm:$0xff] %v1469
        %1478 = vst [vmem:[%s242 + $0x20] sm:$0xff] %v1470
        %1479 = vst [vmem:[%s242 + $0x28] sm:$0xff] %v1471
        %1480 = vst [vmem:[%s242 + $0x30] sm:$0xff] %v1472
        %1481 = vst [vmem:[%s242 + $0x38] sm:$0xff] %v1473
        %s1482 = sand.u32 %s153, 1
        %s1483 = scalar_lea.sflag [#allocation3], %s1482
        %s1484 = sand.u32 %s153, 1
        %s1485 = smul.addr %s1484, 64
        %s1486 = scalar_lea.vmem [#allocation2], %s1485
        // Predicated region
        $region41: #{tpu_custom_call.1} parent=39 // pred_check
          %p1487 = pneg %p163
        $region42: #{tpu_custom_call.1} parent=39 // pred_check_branch
          %1489 = sbr.rel (%p1487) target = $region44
        $region43: #{tpu_custom_call.1} parent=39 // pred_region
          %s1490 = smul.u32 2, %s24
          %s1492 = ssub.s32 1024, 1024
          %1493 = vsyncadd %s1483, %s1492
          %s1494 = smul.addr %s23, 8
          %s1495 = sadd.s32 %s1490, %s1494
          %s1496 = smul.addr %s1495, 128
          %s1497 = scalar_lea.hbm %s5, %s1496
          %s1498 = sshll.u32 %s1486, 4
          %s1499 = int_to_ptr.vmem [resolvable:$true] %s1498
          %1504 = dma.vmem_to_hbm [thread:$0]  %s1499, 1024, %s1497, %s1483, 256, 256, 16
        $region44: #{tpu_custom_call.1} parent=39 // pred_fallthru
          _
      $region40: #{tpu_custom_call.1} parent=5 // pred_fallthru
        _
      %p1505 = scmp.le.s32.totalorder 2, %s14
      // Predicated region
      $region45: #{tpu_custom_call.1} parent=5 // pred_check
        %p1506 = pneg %p1505
      $region46: #{tpu_custom_call.1} parent=5 // pred_check_branch
        %1508 = sbr.rel (%p1506) target = $region48
      $region47: #{tpu_custom_call.1} parent=5 // pred_region
        %s1509 = ssub.s32 %s14, 2
        // Predicated region
        $region49: #{tpu_custom_call.1} parent=47 // pred_check
          %p1510 = pneg %p169
        $region50: #{tpu_custom_call.1} parent=47 // pred_check_branch
          %1512 = sbr.rel (%p1510) target = $region52
        $region51: #{tpu_custom_call.1} parent=47 // pred_region
          %s1513 = sand.u32 %s154, 1
          %s1514 = scalar_lea.sflag [#allocation3], %s1513
          %s1515 = sand.u32 %s154, 1
          %s1516 = smul.addr %s1515, 64
          %s1517 = scalar_lea.vmem [#allocation2], %s1516
          %1518 = dma.done %s1514, 1024
        $region52: #{tpu_custom_call.1} parent=47 // pred_fallthru
          _
      $region48: #{tpu_custom_call.1} parent=5 // pred_fallthru
        _
    $region6: #{tpu_custom_call.1} parent=1 // loop_footer
      %s18 = sadd.s32 1, %s14
    $region7: #{tpu_custom_call.1} parent=1 // loop_footer_branch
      %13 = sbr.rel target = $region3
    $region8: #{tpu_custom_call.1} parent=1 // loop_exit
      _
    %1519 = vsyncpa [#allocation3], 1
    %s1520 = scalar_lea.sflag [#allocation3], 1
    %1521 = vsyncpa %s1520, 1

</llo_original>
